<compile_context>
chip_gen: v5e
topology: v5e:2x2
jax: 0.10.0
libtpu: 0.0.40
codegen_flags: <defaults>
</compile_context>

<pallas_src>
import functools

import jax
import jax.numpy as jnp
from jax.experimental import pallas as pl
from jax.experimental.pallas import tpu as pltpu


def _round_up(x, m):
    return (x + m - 1) // m * m


# ----------------------------------------------------------------------------
# Fused kernel: conv-matmul + relu -> fc1 + relu -> GRUCell -> fc2
# ----------------------------------------------------------------------------
def _fused_kernel(img_ref, vec_ref, h_ref,
                  t_ref, bc_ref, w1_ref, b1_ref,
                  wi_ref, wh_ref, bi_ref, bhn_ref,
                  w2_ref, b2_ref,
                  q_ref, h_out_ref, *, ncpp, hp):
    f32 = jnp.float32
    img = img_ref[...]            # (rb, C*H*W)
    h_in = h_ref[...]             # (rb, HP)

    # Conv as one matmul against the host-built Toeplitz weight, + bias, relu.
    conv = jnp.dot(img, t_ref[...], preferred_element_type=f32) + bc_ref[...]
    conv = jnp.maximum(conv, 0.0)                       # (rb, NCPP)

    # fc1 + relu.  w1 holds [conv-part ; vec-part] stacked on rows (8-aligned
    # split at ncpp), so "flatten + concat" never materializes.
    y = (jnp.dot(conv, w1_ref[:ncpp, :], preferred_element_type=f32)
         + jnp.dot(vec_ref[...], w1_ref[ncpp:, :], preferred_element_type=f32)
         + b1_ref[...])
    y = jnp.maximum(y, 0.0)                             # (rb, HP)

    # GRUCell (PyTorch gate order r, z, n), merged gate matmuls.
    # bi already holds [b_ir+b_hr | b_iz+b_hz | b_in]; bhn is separate.
    gi = jnp.dot(y, wi_ref[...], preferred_element_type=f32) + bi_ref[...]
    gh = jnp.dot(h_in, wh_ref[...], preferred_element_type=f32)
    r = jax.nn.sigmoid(gi[:, 0:hp] + gh[:, 0:hp])
    z = jax.nn.sigmoid(gi[:, hp:2 * hp] + gh[:, hp:2 * hp])
    n = jnp.tanh(gi[:, 2 * hp:3 * hp] + r * (gh[:, 2 * hp:3 * hp] + bhn_ref[...]))
    h_new = (1.0 - z) * n + z * h_in                    # (rb, HP)

    # fc2 (weights padded to 128 lanes -> lane-dense store).
    q_ref[...] = jnp.dot(h_new, w2_ref[...], preferred_element_type=f32) + b2_ref[...]
    h_out_ref[...] = h_new


# ----------------------------------------------------------------------------
# Host-side weight prep: conv -> big matmul weight (column order = NCHW flatten)
# ----------------------------------------------------------------------------
def _conv_as_matmul_weights(conv_w, conv_b, in_h, in_w, stride, ncpp):
    cout, cin, k, _ = conv_w.shape
    ho = (in_h - k) // stride + 1
    wo = (in_w - k) // stride + 1
    p = ho * wo
    co_i, c_i, ki_i, kj_i, ho_i, wo_i = jnp.meshgrid(
        jnp.arange(cout), jnp.arange(cin), jnp.arange(k), jnp.arange(k),
        jnp.arange(ho), jnp.arange(wo), indexing="ij")
    rows = (c_i * (in_h * in_w)
            + (ho_i * stride + ki_i) * in_w
            + (wo_i * stride + kj_i))
    cols = co_i * p + ho_i * wo + wo_i                  # matches NCHW flatten
    vals = conv_w[co_i, c_i, ki_i, kj_i]
    t = jnp.zeros((cin * in_h * in_w, ncpp), jnp.float32)
    t = t.at[rows.ravel(), cols.ravel()].set(vals.ravel().astype(jnp.float32))
    b = jnp.zeros((1, ncpp), jnp.float32)
    b = b.at[0, :cout * p].set(jnp.repeat(conv_b.astype(jnp.float32), p))
    return t, b, ho, wo


def rnn_agent_image_vec_forward(image_inputs, vec_inputs, hidden_state, params,
                                *, kernel_size, stride):
    """Pallas implementation of RNNAgentImageVec.forward (returns (q, h))."""
    f32 = jnp.float32
    B, C, Hin, Win = image_inputs.shape
    K, S = kernel_size, stride
    Cout = params["conv_w"].shape[0]
    Hd = params["fc1_w"].shape[0]
    A = params["fc2_w"].shape[0]
    Ho = (Hin - K) // S + 1
    Wo = (Win - K) // S + 1
    P = Ho * Wo
    NCP = Cout * P
    VEC = vec_inputs.shape[1]
    CHW = C * Hin * Win

    # Padded (lane/sublane-friendly) sizes.
    HP = _round_up(Hd, 128)           # hidden padded to 128 lanes
    AP = _round_up(A, 128)            # actions padded to 128 lanes
    NCPP = _round_up(NCP, 8)          # conv-feature columns (8-aligned split)
    VECP = _round_up(max(VEC, 1), 8)  # vec features (8-aligned rows in w1)

    # ---- host-side weight prep (cheap, pure data reshuffling) ---------------
    t_conv, b_conv, _, _ = _conv_as_matmul_weights(
        params["conv_w"], params["conv_b"], Hin, Win, S, NCPP)

    w1 = jnp.zeros((NCPP + VECP, HP), f32)
    w1 = w1.at[:NCP, :Hd].set(params["fc1_w"][:, :NCP].T)
    w1 = w1.at[NCPP:NCPP + VEC, :Hd].set(params["fc1_w"][:, NCP:].T)
    b1 = jnp.zeros((1, HP), f32).at[0, :Hd].set(params["fc1_b"])

    w_ih, w_hh = params["gru_w_ih"], params["gru_w_hh"]    # (3Hd, Hd) each
    b_ih, b_hh = params["gru_b_ih"], params["gru_b_hh"]    # (3Hd,) each
    wi = jnp.zeros((HP, 3 * HP), f32)
    wh = jnp.zeros((HP, 3 * HP), f32)
    for g in range(3):
        wi = wi.at[:Hd, g * HP:g * HP + Hd].set(w_ih[g * Hd:(g + 1) * Hd, :].T)
        wh = wh.at[:Hd, g * HP:g * HP + Hd].set(w_hh[g * Hd:(g + 1) * Hd, :].T)
    bi = jnp.zeros((1, 3 * HP), f32)
    bi = bi.at[0, 0 * HP:0 * HP + Hd].set(b_ih[0:Hd] + b_hh[0:Hd])
    bi = bi.at[0, 1 * HP:1 * HP + Hd].set(b_ih[Hd:2 * Hd] + b_hh[Hd:2 * Hd])
    bi = bi.at[0, 2 * HP:2 * HP + Hd].set(b_ih[2 * Hd:3 * Hd])
    bhn = jnp.zeros((1, HP), f32).at[0, :Hd].set(b_hh[2 * Hd:3 * Hd])

    w2 = jnp.zeros((HP, AP), f32).at[:Hd, :A].set(params["fc2_w"].T)
    b2 = jnp.zeros((1, AP), f32).at[0, :A].set(params["fc2_b"])

    # ---- batch-row padding + row-block grid ---------------------------------
    rb = min(256, _round_up(B, 8))    # 8-aligned row block (<= 256 rows/step)
    Bp = _round_up(B, rb)

    img_flat = image_inputs.reshape(B, CHW).astype(f32)   # free NCHW flatten
    img_p = jnp.zeros((Bp, CHW), f32).at[:B].set(img_flat)
    vec_p = jnp.zeros((Bp, VECP), f32).at[:B, :VEC].set(vec_inputs.astype(f32))
    h_in = hidden_state.reshape(-1, Hd).astype(f32)
    h_p = jnp.zeros((Bp, HP), f32).at[:h_in.shape[0], :Hd].set(h_in)

    kernel = functools.partial(_fused_kernel, ncpp=NCPP, hp=HP)

    q_p, h_out_p = pl.pallas_call(
        kernel,
        out_shape=(jax.ShapeDtypeStruct((Bp, AP), f32),
                   jax.ShapeDtypeStruct((Bp, HP), f32)),
        grid=(Bp // rb,),
        in_specs=[
            pl.BlockSpec((rb, CHW), lambda i: (i, 0)),          # image (flat)
            pl.BlockSpec((rb, VECP), lambda i: (i, 0)),         # vec features
            pl.BlockSpec((rb, HP), lambda i: (i, 0)),           # hidden in
            pl.BlockSpec((CHW, NCPP), lambda i: (0, 0)),        # conv matmul W
            pl.BlockSpec((1, NCPP), lambda i: (0, 0)),          # conv bias
            pl.BlockSpec((NCPP + VECP, HP), lambda i: (0, 0)),  # fc1 W (merged)
            pl.BlockSpec((1, HP), lambda i: (0, 0)),            # fc1 b
            pl.BlockSpec((HP, 3 * HP), lambda i: (0, 0)),       # GRU W_ih (merged)
            pl.BlockSpec((HP, 3 * HP), lambda i: (0, 0)),       # GRU W_hh (merged)
            pl.BlockSpec((1, 3 * HP), lambda i: (0, 0)),        # GRU folded biases
            pl.BlockSpec((1, HP), lambda i: (0, 0)),            # GRU b_hn
            pl.BlockSpec((HP, AP), lambda i: (0, 0)),           # fc2 W
            pl.BlockSpec((1, AP), lambda i: (0, 0)),            # fc2 b
        ],
        out_specs=(
            pl.BlockSpec((rb, AP), lambda i: (i, 0)),           # q (padded)
            pl.BlockSpec((rb, HP), lambda i: (i, 0)),           # h (padded)
        ),
        input_output_aliases={2: 1},   # hidden_state buffer -> h output
        compiler_params=pltpu.CompilerParams(
            dimension_semantics=("parallel",)),
    )(img_p, vec_p, h_p, t_conv, b_conv, w1, b1,
      wi, wh, bi, bhn, w2, b2)

    q = q_p[:B, :A]
    h = h_out_p[:B, :Hd]
    # TODO(synk): args.mutual_information_reinforcement=True branch (also
    # returning x) is not emitted; this mirrors the default (q, h) return.
    return q, h


# ----------------------------------------------------------------------------
# Pure-JAX reference (mirrors the PyTorch forward) for validation.
# ----------------------------------------------------------------------------
def _reference_forward(image_inputs, vec_inputs, hidden_state, params,
                       *, kernel_size, stride):
    Wc, bc = params["conv_w"], params["conv_b"]
    conv = jax.lax.conv_general_dilated(
        image_inputs, Wc, window_strides=(stride, stride), padding="VALID",
        dimension_numbers=("NCHW", "OIHW", "NCHW"))
    conv = conv + bc.reshape(1, -1, 1, 1)
    x = jnp.maximum(conv, 0.0).reshape(image_inputs.shape[0], -1)
    x = jnp.concatenate([x, vec_inputs], axis=-1)
    y = jnp.maximum(x @ params["fc1_w"].T + params["fc1_b"], 0.0)
    Hd = params["fc1_w"].shape[0]
    h_in = hidden_state.reshape(-1, Hd)
    gi = y @ params["gru_w_ih"].T + params["gru_b_ih"]
    gh = h_in @ params["gru_w_hh"].T + params["gru_b_hh"]
    r = jax.nn.sigmoid(gi[:, :Hd] + gh[:, :Hd])
    z = jax.nn.sigmoid(gi[:, Hd:2 * Hd] + gh[:, Hd:2 * Hd])
    n = jnp.tanh(gi[:, 2 * Hd:] + r * gh[:, 2 * Hd:])
    h = (1.0 - z) * n + z * h_in
    q = h @ params["fc2_w"].T + params["fc2_b"]
    return q, h


if __name__ == "__main__":
    # Small synthetic config (mirrors args / scheme of the PyTorch module).
    B = 2                     # batch (n_agents * batch in pymarl terms)
    C, Hin, Win = 4, 16, 16   # scheme['obs']['vshape']
    K, S = 3, 2               # args.kernel_size, args.stride
    COUT = 8                  # args.conv_out_dim
    HID = 32                  # args.rnn_hidden_dim
    NACT = 6                  # args.n_actions
    NAG = 3                   # args.n_agents
    VEC = NACT + NAG          # obs_last_action + obs_agent_id

    Ho = (Hin - K) // S + 1
    Wo = (Win - K) // S + 1
    D = COUT * Ho * Wo + VEC

    key = jax.random.PRNGKey(0)
    ks = jax.random.split(key, 12)

    params = {
        "conv_w": 0.1 * jax.random.normal(ks[0], (COUT, C, K, K), jnp.float32),
        "conv_b": 0.1 * jax.random.normal(ks[1], (COUT,), jnp.float32),
        "fc1_w": 0.05 * jax.random.normal(ks[2], (HID, D), jnp.float32),
        "fc1_b": 0.05 * jax.random.normal(ks[3], (HID,), jnp.float32),
        "gru_w_ih": 0.1 * jax.random.normal(ks[4], (3 * HID, HID), jnp.float32),
        "gru_w_hh": 0.1 * jax.random.normal(ks[5], (3 * HID, HID), jnp.float32),
        "gru_b_ih": 0.1 * jax.random.normal(ks[6], (3 * HID,), jnp.float32),
        "gru_b_hh": 0.1 * jax.random.normal(ks[7], (3 * HID,), jnp.float32),
        "fc2_w": 0.1 * jax.random.normal(ks[8], (NACT, HID), jnp.float32),
        "fc2_b": 0.1 * jax.random.normal(ks[9], (NACT,), jnp.float32),
    }

    image_inputs = jax.random.normal(ks[10], (B, C, Hin, Win), jnp.float32)
    vec_inputs = jax.random.normal(ks[11], (B, VEC), jnp.float32)
    hidden_state = jnp.zeros((B, HID), jnp.float32)   # init_hidden().expand(...)

    q, h = rnn_agent_image_vec_forward(
        image_inputs, vec_inputs, hidden_state, params,
        kernel_size=K, stride=S)
    jax.block_until_ready((q, h))

    q_ref, h_ref = _reference_forward(
        image_inputs, vec_inputs, hidden_state, params,
        kernel_size=K, stride=S)

    assert q.shape == (B, NACT) and h.shape == (B, HID)
    assert jnp.allclose(q, q_ref, atol=5e-3, rtol=5e-3), "q mismatch vs reference"
    assert jnp.allclose(h, h_ref, atol=5e-3, rtol=5e-3), "h mismatch vs reference"

    print("KERNEL_OK")
</pallas_src>

<mosaic_0001>
module attributes {stable_mosaic.version = 11 : i64} {
  func.func @_fused_kernel(%arg0: i32, %arg1: memref<8x1024xf32, #tpu.memory_space<vmem>>, %arg2: memref<8x16xf32, #tpu.memory_space<vmem>>, %arg3: memref<8x128xf32, #tpu.memory_space<vmem>>, %arg4: memref<1024x392xf32, #tpu.memory_space<vmem>>, %arg5: memref<1x392xf32, #tpu.memory_space<vmem>>, %arg6: memref<408x128xf32, #tpu.memory_space<vmem>>, %arg7: memref<1x128xf32, #tpu.memory_space<vmem>>, %arg8: memref<128x384xf32, #tpu.memory_space<vmem>>, %arg9: memref<128x384xf32, #tpu.memory_space<vmem>>, %arg10: memref<1x384xf32, #tpu.memory_space<vmem>>, %arg11: memref<1x128xf32, #tpu.memory_space<vmem>>, %arg12: memref<128x128xf32, #tpu.memory_space<vmem>>, %arg13: memref<1x128xf32, #tpu.memory_space<vmem>>, %arg14: memref<8x128xf32, #tpu.memory_space<vmem>>, %arg15: memref<8x128xf32, #tpu.memory_space<vmem>>) attributes {dimension_semantics = [#tpu.dimension_semantics<parallel>], iteration_bounds = array<i64: 1>, scalar_prefetch = 0 : i64, scratch_operands = 0 : i64, tpu.core_type = #tpu.core_type<tc>, window_params = [{transform_indices = @transform_0, window_bounds = array<i64: 8, 1024>}, {transform_indices = @transform_1, window_bounds = array<i64: 8, 16>}, {transform_indices = @transform_2, window_bounds = array<i64: 8, 128>}, {pipeline_mode = #tpu.pipeline_mode<synchronous>, transform_indices = @transform_3, window_bounds = array<i64: 1024, 392>}, {pipeline_mode = #tpu.pipeline_mode<synchronous>, transform_indices = @transform_4, window_bounds = array<i64: 1, 392>}, {pipeline_mode = #tpu.pipeline_mode<synchronous>, transform_indices = @transform_5, window_bounds = array<i64: 408, 128>}, {pipeline_mode = #tpu.pipeline_mode<synchronous>, transform_indices = @transform_6, window_bounds = array<i64: 1, 128>}, {pipeline_mode = #tpu.pipeline_mode<synchronous>, transform_indices = @transform_7, window_bounds = array<i64: 128, 384>}, {pipeline_mode = #tpu.pipeline_mode<synchronous>, transform_indices = @transform_8, window_bounds = array<i64: 128, 384>}, {pipeline_mode = #tpu.pipeline_mode<synchronous>, transform_indices = @transform_9, window_bounds = array<i64: 1, 384>}, {pipeline_mode = #tpu.pipeline_mode<synchronous>, transform_indices = @transform_10, window_bounds = array<i64: 1, 128>}, {pipeline_mode = #tpu.pipeline_mode<synchronous>, transform_indices = @transform_11, window_bounds = array<i64: 128, 128>}, {pipeline_mode = #tpu.pipeline_mode<synchronous>, transform_indices = @transform_12, window_bounds = array<i64: 1, 128>}, {transform_indices = @transform_13, window_bounds = array<i64: 8, 128>}, {transform_indices = @transform_14, window_bounds = array<i64: 8, 128>}]} {
    %c0 = arith.constant 0 : index
    %c0_0 = arith.constant 0 : index
    %0 = vector.load %arg1[%c0, %c0_0] : memref<8x1024xf32, #tpu.memory_space<vmem>>, vector<8x1024xf32>
    %c0_1 = arith.constant 0 : index
    %c0_2 = arith.constant 0 : index
    %1 = vector.load %arg3[%c0_1, %c0_2] : memref<8x128xf32, #tpu.memory_space<vmem>>, vector<8x128xf32>
    %c0_3 = arith.constant 0 : index
    %c0_4 = arith.constant 0 : index
    %2 = vector.load %arg4[%c0_3, %c0_4] : memref<1024x392xf32, #tpu.memory_space<vmem>>, vector<1024x392xf32>
    %cst = arith.constant dense<0.000000e+00> : vector<8x392xf32>
    %3 = tpu.matmul %0, %2, %cst {dimension_numbers = #tpu.dot_dimension_numbers<[1], [0], [0], [1], [0, 0, 1, 1], [], []>} : vector<8x1024xf32>, vector<1024x392xf32>, vector<8x392xf32> -> vector<8x392xf32>
    %c0_5 = arith.constant 0 : index
    %c0_6 = arith.constant 0 : index
    %4 = vector.load %arg5[%c0_5, %c0_6] : memref<1x392xf32, #tpu.memory_space<vmem>>, vector<1x392xf32>
    %5 = vector.broadcast %4 : vector<1x392xf32> to vector<8x392xf32>
    %6 = arith.addf %3, %5 : vector<8x392xf32>
    %cst_7 = arith.constant 0.000000e+00 : f32
    %7 = vector.broadcast %cst_7 : f32 to vector<8x392xf32>
    %8 = arith.maximumf %6, %7 : vector<8x392xf32>
    %c0_8 = arith.constant 0 : index
    %c0_9 = arith.constant 0 : index
    %9 = vector.load %arg6[%c0_8, %c0_9] : memref<408x128xf32, #tpu.memory_space<vmem>>, vector<392x128xf32>
    %cst_10 = arith.constant dense<0.000000e+00> : vector<8x128xf32>
    %10 = tpu.matmul %8, %9, %cst_10 {dimension_numbers = #tpu.dot_dimension_numbers<[1], [0], [0], [1], [0, 0, 1, 1], [], []>} : vector<8x392xf32>, vector<392x128xf32>, vector<8x128xf32> -> vector<8x128xf32>
    %c0_11 = arith.constant 0 : index
    %c0_12 = arith.constant 0 : index
    %11 = vector.load %arg2[%c0_11, %c0_12] : memref<8x16xf32, #tpu.memory_space<vmem>>, vector<8x16xf32>
    %c392 = arith.constant 392 : index
    %c0_13 = arith.constant 0 : index
    %12 = vector.load %arg6[%c392, %c0_13] : memref<408x128xf32, #tpu.memory_space<vmem>>, vector<16x128xf32>
    %cst_14 = arith.constant dense<0.000000e+00> : vector<8x128xf32>
    %13 = tpu.matmul %11, %12, %cst_14 {dimension_numbers = #tpu.dot_dimension_numbers<[1], [0], [0], [1], [0, 0, 1, 1], [], []>} : vector<8x16xf32>, vector<16x128xf32>, vector<8x128xf32> -> vector<8x128xf32>
    %14 = arith.addf %10, %13 : vector<8x128xf32>
    %c0_15 = arith.constant 0 : index
    %c0_16 = arith.constant 0 : index
    %15 = vector.load %arg7[%c0_15, %c0_16] : memref<1x128xf32, #tpu.memory_space<vmem>>, vector<1x128xf32>
    %16 = vector.broadcast %15 : vector<1x128xf32> to vector<8x128xf32>
    %17 = arith.addf %14, %16 : vector<8x128xf32>
    %cst_17 = arith.constant 0.000000e+00 : f32
    %18 = vector.broadcast %cst_17 : f32 to vector<8x128xf32>
    %19 = arith.maximumf %17, %18 : vector<8x128xf32>
    %c0_18 = arith.constant 0 : index
    %c0_19 = arith.constant 0 : index
    %20 = vector.load %arg8[%c0_18, %c0_19] : memref<128x384xf32, #tpu.memory_space<vmem>>, vector<128x384xf32>
    %cst_20 = arith.constant dense<0.000000e+00> : vector<8x384xf32>
    %21 = tpu.matmul %19, %20, %cst_20 {dimension_numbers = #tpu.dot_dimension_numbers<[1], [0], [0], [1], [0, 0, 1, 1], [], []>} : vector<8x128xf32>, vector<128x384xf32>, vector<8x384xf32> -> vector<8x384xf32>
    %c0_21 = arith.constant 0 : index
    %c0_22 = arith.constant 0 : index
    %22 = vector.load %arg10[%c0_21, %c0_22] : memref<1x384xf32, #tpu.memory_space<vmem>>, vector<1x384xf32>
    %23 = vector.broadcast %22 : vector<1x384xf32> to vector<8x384xf32>
    %24 = arith.addf %21, %23 : vector<8x384xf32>
    %c0_23 = arith.constant 0 : index
    %c0_24 = arith.constant 0 : index
    %25 = vector.load %arg9[%c0_23, %c0_24] : memref<128x384xf32, #tpu.memory_space<vmem>>, vector<128x384xf32>
    %cst_25 = arith.constant dense<0.000000e+00> : vector<8x384xf32>
    %26 = tpu.matmul %1, %25, %cst_25 {dimension_numbers = #tpu.dot_dimension_numbers<[1], [0], [0], [1], [0, 0, 1, 1], [], []>} : vector<8x128xf32>, vector<128x384xf32>, vector<8x384xf32> -> vector<8x384xf32>
    %27 = vector.extract_strided_slice %24 {offsets = [0, 0], sizes = [8, 128], strides = [1, 1]} : vector<8x384xf32> to vector<8x128xf32>
    %28 = vector.extract_strided_slice %26 {offsets = [0, 0], sizes = [8, 128], strides = [1, 1]} : vector<8x384xf32> to vector<8x128xf32>
    %29 = arith.addf %27, %28 : vector<8x128xf32>
    %30 = arith.negf %29 : vector<8x128xf32>
    %31 = math.exp %30 : vector<8x128xf32>
    %cst_26 = arith.constant 1.000000e+00 : f32
    %32 = vector.broadcast %cst_26 : f32 to vector<8x128xf32>
    %33 = arith.addf %32, %31 : vector<8x128xf32>
    %34 = arith.divf %32, %33 : vector<8x128xf32>
    %35 = vector.extract_strided_slice %24 {offsets = [0, 128], sizes = [8, 128], strides = [1, 1]} : vector<8x384xf32> to vector<8x128xf32>
    %36 = vector.extract_strided_slice %26 {offsets = [0, 128], sizes = [8, 128], strides = [1, 1]} : vector<8x384xf32> to vector<8x128xf32>
    %37 = arith.addf %35, %36 : vector<8x128xf32>
    %38 = arith.negf %37 : vector<8x128xf32>
    %39 = math.exp %38 : vector<8x128xf32>
    %cst_27 = arith.constant 1.000000e+00 : f32
    %40 = vector.broadcast %cst_27 : f32 to vector<8x128xf32>
    %41 = arith.addf %40, %39 : vector<8x128xf32>
    %42 = arith.divf %40, %41 : vector<8x128xf32>
    %43 = vector.extract_strided_slice %24 {offsets = [0, 256], sizes = [8, 128], strides = [1, 1]} : vector<8x384xf32> to vector<8x128xf32>
    %44 = vector.extract_strided_slice %26 {offsets = [0, 256], sizes = [8, 128], strides = [1, 1]} : vector<8x384xf32> to vector<8x128xf32>
    %c0_28 = arith.constant 0 : index
    %c0_29 = arith.constant 0 : index
    %45 = vector.load %arg11[%c0_28, %c0_29] : memref<1x128xf32, #tpu.memory_space<vmem>>, vector<1x128xf32>
    %46 = vector.broadcast %45 : vector<1x128xf32> to vector<8x128xf32>
    %47 = arith.addf %44, %46 : vector<8x128xf32>
    %48 = arith.mulf %34, %47 : vector<8x128xf32>
    %49 = arith.addf %43, %48 : vector<8x128xf32>
    %50 = math.tanh %49 : vector<8x128xf32>
    %cst_30 = arith.constant 1.000000e+00 : f32
    %51 = vector.broadcast %cst_30 : f32 to vector<8x128xf32>
    %52 = arith.subf %51, %42 : vector<8x128xf32>
    %53 = arith.mulf %52, %50 : vector<8x128xf32>
    %54 = arith.mulf %42, %1 : vector<8x128xf32>
    %55 = arith.addf %53, %54 : vector<8x128xf32>
    %c0_31 = arith.constant 0 : index
    %c0_32 = arith.constant 0 : index
    %56 = vector.load %arg12[%c0_31, %c0_32] : memref<128x128xf32, #tpu.memory_space<vmem>>, vector<128x128xf32>
    %cst_33 = arith.constant dense<0.000000e+00> : vector<8x128xf32>
    %57 = tpu.matmul %55, %56, %cst_33 {dimension_numbers = #tpu.dot_dimension_numbers<[1], [0], [0], [1], [0, 0, 1, 1], [], []>} : vector<8x128xf32>, vector<128x128xf32>, vector<8x128xf32> -> vector<8x128xf32>
    %c0_34 = arith.constant 0 : index
    %c0_35 = arith.constant 0 : index
    %58 = vector.load %arg13[%c0_34, %c0_35] : memref<1x128xf32, #tpu.memory_space<vmem>>, vector<1x128xf32>
    %59 = vector.broadcast %58 : vector<1x128xf32> to vector<8x128xf32>
    %60 = arith.addf %57, %59 : vector<8x128xf32>
    %c0_36 = arith.constant 0 : index
    %c0_37 = arith.constant 0 : index
    %61 = vector.load %arg14[%c0_36, %c0_37] : memref<8x128xf32, #tpu.memory_space<vmem>>, vector<8x128xf32>
    tpu.vector_store %arg14[%c0_36, %c0_37], %60 {strides = array<i32>} : memref<8x128xf32, #tpu.memory_space<vmem>>, vector<8x128xf32>,
    %c0_38 = arith.constant 0 : index
    %c0_39 = arith.constant 0 : index
    %62 = vector.load %arg15[%c0_38, %c0_39] : memref<8x128xf32, #tpu.memory_space<vmem>>, vector<8x128xf32>
    tpu.vector_store %arg15[%c0_38, %c0_39], %55 {strides = array<i32>} : memref<8x128xf32, #tpu.memory_space<vmem>>, vector<8x128xf32>,
    return
  }
  func.func @transform_0(%arg0: i32) -> (i32, i32) {
    %c0_i32 = arith.constant 0 : i32
    %c0_i32_0 = arith.constant 0 : i32
    return %arg0, %c0_i32 : i32, i32
  }
  func.func @transform_1(%arg0: i32) -> (i32, i32) {
    %c0_i32 = arith.constant 0 : i32
    %c0_i32_0 = arith.constant 0 : i32
    return %arg0, %c0_i32 : i32, i32
  }
  func.func @transform_2(%arg0: i32) -> (i32, i32) {
    %c0_i32 = arith.constant 0 : i32
    %c0_i32_0 = arith.constant 0 : i32
    return %arg0, %c0_i32 : i32, i32
  }
  func.func @transform_3(%arg0: i32) -> (i32, i32) {
    %c0_i32 = arith.constant 0 : i32
    %c0_i32_0 = arith.constant 0 : i32
    %c0_i32_1 = arith.constant 0 : i32
    return %c0_i32, %c0_i32_0 : i32, i32
  }
  func.func @transform_4(%arg0: i32) -> (i32, i32) {
    %c0_i32 = arith.constant 0 : i32
    %c0_i32_0 = arith.constant 0 : i32
    %c0_i32_1 = arith.constant 0 : i32
    return %c0_i32, %c0_i32_0 : i32, i32
  }
  func.func @transform_5(%arg0: i32) -> (i32, i32) {
    %c0_i32 = arith.constant 0 : i32
    %c0_i32_0 = arith.constant 0 : i32
    %c0_i32_1 = arith.constant 0 : i32
    return %c0_i32, %c0_i32_0 : i32, i32
  }
  func.func @transform_6(%arg0: i32) -> (i32, i32) {
    %c0_i32 = arith.constant 0 : i32
    %c0_i32_0 = arith.constant 0 : i32
    %c0_i32_1 = arith.constant 0 : i32
    return %c0_i32, %c0_i32_0 : i32, i32
  }
  func.func @transform_7(%arg0: i32) -> (i32, i32) {
    %c0_i32 = arith.constant 0 : i32
    %c0_i32_0 = arith.constant 0 : i32
    %c0_i32_1 = arith.constant 0 : i32
    return %c0_i32, %c0_i32_0 : i32, i32
  }
  func.func @transform_8(%arg0: i32) -> (i32, i32) {
    %c0_i32 = arith.constant 0 : i32
    %c0_i32_0 = arith.constant 0 : i32
    %c0_i32_1 = arith.constant 0 : i32
    return %c0_i32, %c0_i32_0 : i32, i32
  }
  func.func @transform_9(%arg0: i32) -> (i32, i32) {
    %c0_i32 = arith.constant 0 : i32
    %c0_i32_0 = arith.constant 0 : i32
    %c0_i32_1 = arith.constant 0 : i32
    return %c0_i32, %c0_i32_0 : i32, i32
  }
  func.func @transform_10(%arg0: i32) -> (i32, i32) {
    %c0_i32 = arith.constant 0 : i32
    %c0_i32_0 = arith.constant 0 : i32
    %c0_i32_1 = arith.constant 0 : i32
    return %c0_i32, %c0_i32_0 : i32, i32
  }
  func.func @transform_11(%arg0: i32) -> (i32, i32) {
    %c0_i32 = arith.constant 0 : i32
    %c0_i32_0 = arith.constant 0 : i32
    %c0_i32_1 = arith.constant 0 : i32
    return %c0_i32, %c0_i32_0 : i32, i32
  }
  func.func @transform_12(%arg0: i32) -> (i32, i32) {
    %c0_i32 = arith.constant 0 : i32
    %c0_i32_0 = arith.constant 0 : i32
    %c0_i32_1 = arith.constant 0 : i32
    return %c0_i32, %c0_i32_0 : i32, i32
  }
  func.func @transform_13(%arg0: i32) -> (i32, i32) {
    %c0_i32 = arith.constant 0 : i32
    %c0_i32_0 = arith.constant 0 : i32
    return %arg0, %c0_i32 : i32, i32
  }
  func.func @transform_14(%arg0: i32) -> (i32, i32) {
    %c0_i32 = arith.constant 0 : i32
    %c0_i32_0 = arith.constant 0 : i32
    return %arg0, %c0_i32 : i32, i32
  }
}

</mosaic_0001>

<llo_original>
// kernel: tpu_custom_call.1
$region0: #{tpu_custom_call.1}
  #allocation0 [shape = 'u32[]', space=smem, size = 0x4, offset = 0x4, fixed_abs, tag = 'smem constant byte address 0x4 - core index']
  #allocation1 [shape = 'u32[72,128]{1,0:T(1,128)}', space=vmem, size = 0x9000, scoped, tag = 'internal scratch']
  %s0 = inlined_call_operand.vmem [shape: f32[8,1024], index: 0, kind: input, shape index: {}]
  %s1 = inlined_call_operand.vmem [shape: f32[8,16], index: 1, kind: input, shape index: {}]
  %s2 = inlined_call_operand.hbm [shape: f32[8,128], index: 2, kind: input, shape index: {}, may-alias: {2,14}]
  %s3 = inlined_call_operand.vmem [shape: f32[1024,392], index: 3, kind: input, shape index: {}]
  %s4 = inlined_call_operand.vmem [shape: f32[1,392], index: 4, kind: input, shape index: {}]
  %s5 = inlined_call_operand.vmem [shape: f32[408,128], index: 5, kind: input, shape index: {}]
  %s6 = inlined_call_operand.vmem [shape: f32[1,128], index: 6, kind: input, shape index: {}]
  %s7 = inlined_call_operand.vmem [shape: f32[128,384], index: 7, kind: input, shape index: {}]
  %s8 = inlined_call_operand.vmem [shape: f32[128,384], index: 8, kind: input, shape index: {}]
  %s9 = inlined_call_operand.vmem [shape: f32[1,384], index: 9, kind: input, shape index: {}]
  %s10 = inlined_call_operand.vmem [shape: f32[1,128], index: 10, kind: input, shape index: {}]
  %s11 = inlined_call_operand.vmem [shape: f32[128,128], index: 11, kind: input, shape index: {}]
  %s12 = inlined_call_operand.vmem [shape: f32[1,128], index: 12, kind: input, shape index: {}]
  %s13 = inlined_call_operand.hbm [shape: f32[8,128], index: 13, kind: output, shape index: {0}]
  %s14 = inlined_call_operand.hbm [shape: f32[8,128], index: 14, kind: output, shape index: {1}, may-alias: {2,14}]
  %15 = xla_tuple %s13, %s14
  %s16 = sld [smem:[#allocation0]]
  $region74: #{tpu_custom_call.1} parent=0
    _
  %s18 = ssub.s32 1, %s16
  %s19 = scalar_select 0, %s18, %s16
  $region1: #{tpu_custom_call.1} parent=0
    #allocation2 [shape = 'u8[4096]{0}', space=vmem, size = 0x1000, scoped, tag = 'input window, operand 2, single buffered']
    #allocation3 [shape = 's32[1]{0}', space=sflag, size = 0x4, scoped, tag = 'scoped memory for tpu_custom_call.1']
    #allocation4 [shape = 's32[1]{0}', space=sflag, size = 0x4, scoped, tag = 'scoped memory for tpu_custom_call.1']
    #allocation5 [shape = 'u8[4096]{0}', space=vmem, size = 0x1000, scoped, tag = 'output window, operand 0, single buffered']
    #allocation6 [shape = 'u8[4096]{0}', space=vmem, size = 0x1000, scoped, tag = 'output window, operand 1, single buffered']
    #allocation7 [shape = 's32[1]{0}', space=sflag, size = 0x4, scoped, tag = 'scoped memory for tpu_custom_call.1']
    %20 = vsyncpa [#allocation3], 0
    %21 = vsyncpa [#allocation4], 0
    %22 = vsyncpa [#allocation7], 0
    // Predicated region
    $region2: #{tpu_custom_call.1} parent=1 // pred_check
      _
    $region3: #{tpu_custom_call.1} parent=1 // pred_check_branch
      %24 = sbr.rel (0) target = $region5
    $region4: #{tpu_custom_call.1} parent=1 // pred_region
      _
    $region5: #{tpu_custom_call.1} parent=1 // pred_fallthru
      _
    // Predicated region
    $region6: #{tpu_custom_call.1} parent=1 // pred_check
      _
    $region7: #{tpu_custom_call.1} parent=1 // pred_check_branch
      %26 = sbr.rel (0) target = $region9
    $region8: #{tpu_custom_call.1} parent=1 // pred_region
      _
    $region9: #{tpu_custom_call.1} parent=1 // pred_fallthru
      _
    // Predicated region
    $region10: #{tpu_custom_call.1} parent=1 // pred_check
      _
    $region11: #{tpu_custom_call.1} parent=1 // pred_check_branch
      %28 = sbr.rel (0) target = $region13
    $region12: #{tpu_custom_call.1} parent=1 // pred_region
      %30 = vsyncadd [#allocation3], 0
      %s32 = sshll.u32 %s2, 4
      %s33 = int_to_ptr.hbm [resolvable:$true] %s32
      %s34 = sshll.u32 [#allocation2], 4
      %s35 = int_to_ptr.vmem [resolvable:$true] %s34
      %37 = dma.hbm_to_vmem [thread:$0]  %s33, 128, %s35, [#allocation3]
    $region13: #{tpu_custom_call.1} parent=1 // pred_fallthru
      _
    // Predicated region
    $region14: #{tpu_custom_call.1} parent=1 // pred_check
      _
    $region15: #{tpu_custom_call.1} parent=1 // pred_check_branch
      %39 = sbr.rel (0) target = $region17
    $region16: #{tpu_custom_call.1} parent=1 // pred_region
      _
    $region17: #{tpu_custom_call.1} parent=1 // pred_fallthru
      _
    // Predicated region
    $region18: #{tpu_custom_call.1} parent=1 // pred_check
      _
    $region19: #{tpu_custom_call.1} parent=1 // pred_check_branch
      %41 = sbr.rel (0) target = $region21
    $region20: #{tpu_custom_call.1} parent=1 // pred_region
      _
    $region21: #{tpu_custom_call.1} parent=1 // pred_fallthru
      _
    // Predicated region
    $region22: #{tpu_custom_call.1} parent=1 // pred_check
      _
    $region23: #{tpu_custom_call.1} parent=1 // pred_check_branch
      %43 = sbr.rel (0) target = $region25
    $region24: #{tpu_custom_call.1} parent=1 // pred_region
      _
    $region25: #{tpu_custom_call.1} parent=1 // pred_fallthru
      _
    // Predicated region
    $region26: #{tpu_custom_call.1} parent=1 // pred_check
      _
    $region27: #{tpu_custom_call.1} parent=1 // pred_check_branch
      %45 = sbr.rel (0) target = $region29
    $region28: #{tpu_custom_call.1} parent=1 // pred_region
      _
    $region29: #{tpu_custom_call.1} parent=1 // pred_fallthru
      _
    // Predicated region
    $region30: #{tpu_custom_call.1} parent=1 // pred_check
      _
    $region31: #{tpu_custom_call.1} parent=1 // pred_check_branch
      %47 = sbr.rel (0) target = $region33
    $region32: #{tpu_custom_call.1} parent=1 // pred_region
      _
    $region33: #{tpu_custom_call.1} parent=1 // pred_fallthru
      _
    // Predicated region
    $region34: #{tpu_custom_call.1} parent=1 // pred_check
      _
    $region35: #{tpu_custom_call.1} parent=1 // pred_check_branch
      %49 = sbr.rel (0) target = $region37
    $region36: #{tpu_custom_call.1} parent=1 // pred_region
      _
    $region37: #{tpu_custom_call.1} parent=1 // pred_fallthru
      _
    // Predicated region
    $region38: #{tpu_custom_call.1} parent=1 // pred_check
      _
    $region39: #{tpu_custom_call.1} parent=1 // pred_check_branch
      %51 = sbr.rel (0) target = $region41
    $region40: #{tpu_custom_call.1} parent=1 // pred_region
      _
    $region41: #{tpu_custom_call.1} parent=1 // pred_fallthru
      _
    // Predicated region
    $region42: #{tpu_custom_call.1} parent=1 // pred_check
      _
    $region43: #{tpu_custom_call.1} parent=1 // pred_check_branch
      %53 = sbr.rel (0) target = $region45
    $region44: #{tpu_custom_call.1} parent=1 // pred_region
      _
    $region45: #{tpu_custom_call.1} parent=1 // pred_fallthru
      _
    // Predicated region
    $region46: #{tpu_custom_call.1} parent=1 // pred_check
      _
    $region47: #{tpu_custom_call.1} parent=1 // pred_check_branch
      %55 = sbr.rel (0) target = $region49
    $region48: #{tpu_custom_call.1} parent=1 // pred_region
      _
    $region49: #{tpu_custom_call.1} parent=1 // pred_fallthru
      _
    // Predicated region
    $region50: #{tpu_custom_call.1} parent=1 // pred_check
      _
    $region51: #{tpu_custom_call.1} parent=1 // pred_check_branch
      %57 = sbr.rel (0) target = $region53
    $region52: #{tpu_custom_call.1} parent=1 // pred_region
      _
    $region53: #{tpu_custom_call.1} parent=1 // pred_fallthru
      _
    // Predicated region
    $region54: #{tpu_custom_call.1} parent=1 // pred_check
      _
    $region55: #{tpu_custom_call.1} parent=1 // pred_check_branch
      %59 = sbr.rel (0) target = $region57
    $region56: #{tpu_custom_call.1} parent=1 // pred_region
      %61 = dma.done [#allocation3], 128
    $region57: #{tpu_custom_call.1} parent=1 // pred_fallthru
      _
    %v62 = vld [vmem:[%s0] sm:$0xff]
    %v63 = vld [vmem:[%s0 + $0x8] sm:$0xff]
    %v64 = vld [vmem:[%s0 + $0x10] sm:$0xff]
    %v65 = vld [vmem:[%s0 + $0x18] sm:$0xff]
    %v66 = vld [vmem:[%s0 + $0x20] sm:$0xff]
    %v67 = vld [vmem:[%s0 + $0x28] sm:$0xff]
    %v68 = vld [vmem:[%s0 + $0x30] sm:$0xff]
    %v69 = vld [vmem:[%s0 + $0x38] sm:$0xff]
    %v70 = vld [vmem:[#allocation2] sm:$0xff]
    %v71 = vld [vmem:[%s3] sm:$0xff]
    %v72 = vld [vmem:[%s3 + $0x8] sm:$0xff]
    %v73 = vld [vmem:[%s3 + $0x10] sm:$0xff]
    %v74 = vld [vmem:[%s3 + $0x18] sm:$0xff]
    %v75 = vld [vmem:[%s3 + $0x20] sm:$0xff]
    %v76 = vld [vmem:[%s3 + $0x28] sm:$0xff]
    %v77 = vld [vmem:[%s3 + $0x30] sm:$0xff]
    %v78 = vld [vmem:[%s3 + $0x38] sm:$0xff]
    %v79 = vld [vmem:[%s3 + $0x40] sm:$0xff]
    %v80 = vld [vmem:[%s3 + $0x48] sm:$0xff]
    %v81 = vld [vmem:[%s3 + $0x50] sm:$0xff]
    %v82 = vld [vmem:[%s3 + $0x58] sm:$0xff]
    %v83 = vld [vmem:[%s3 + $0x60] sm:$0xff]
    %v84 = vld [vmem:[%s3 + $0x68] sm:$0xff]
    %v85 = vld [vmem:[%s3 + $0x70] sm:$0xff]
    %v86 = vld [vmem:[%s3 + $0x78] sm:$0xff]
    %v87 = vld [vmem:[%s3 + $0x80] sm:$0xff]
    %v88 = vld [vmem:[%s3 + $0x88] sm:$0xff]
    %v89 = vld [vmem:[%s3 + $0x90] sm:$0xff]
    %v90 = vld [vmem:[%s3 + $0x98] sm:$0xff]
    %v91 = vld [vmem:[%s3 + $0xa0] sm:$0xff]
    %v92 = vld [vmem:[%s3 + $0xa8] sm:$0xff]
    %v93 = vld [vmem:[%s3 + $0xb0] sm:$0xff]
    %v94 = vld [vmem:[%s3 + $0xb8] sm:$0xff]
    %v95 = vld [vmem:[%s3 + $0xc0] sm:$0xff]
    %v96 = vld [vmem:[%s3 + $0xc8] sm:$0xff]
    %v97 = vld [vmem:[%s3 + $0xd0] sm:$0xff]
    %v98 = vld [vmem:[%s3 + $0xd8] sm:$0xff]
    %v99 = vld [vmem:[%s3 + $0xe0] sm:$0xff]
    %v100 = vld [vmem:[%s3 + $0xe8] sm:$0xff]
    %v101 = vld [vmem:[%s3 + $0xf0] sm:$0xff]
    %v102 = vld [vmem:[%s3 + $0xf8] sm:$0xff]
    %v103 = vld [vmem:[%s3 + $0x100] sm:$0xff]
    %v104 = vld [vmem:[%s3 + $0x108] sm:$0xff]
    %v105 = vld [vmem:[%s3 + $0x110] sm:$0xff]
    %v106 = vld [vmem:[%s3 + $0x118] sm:$0xff]
    %v107 = vld [vmem:[%s3 + $0x120] sm:$0xff]
    %v108 = vld [vmem:[%s3 + $0x128] sm:$0xff]
    %v109 = vld [vmem:[%s3 + $0x130] sm:$0xff]
    %v110 = vld [vmem:[%s3 + $0x138] sm:$0xff]
    %v111 = vld [vmem:[%s3 + $0x140] sm:$0xff]
    %v112 = vld [vmem:[%s3 + $0x148] sm:$0xff]
    %v113 = vld [vmem:[%s3 + $0x150] sm:$0xff]
    %v114 = vld [vmem:[%s3 + $0x158] sm:$0xff]
    %v115 = vld [vmem:[%s3 + $0x160] sm:$0xff]
    %v116 = vld [vmem:[%s3 + $0x168] sm:$0xff]
    %v117 = vld [vmem:[%s3 + $0x170] sm:$0xff]
    %v118 = vld [vmem:[%s3 + $0x178] sm:$0xff]
    %v119 = vld [vmem:[%s3 + $0x180] sm:$0xff]
    %v120 = vld [vmem:[%s3 + $0x188] sm:$0xff]
    %v121 = vld [vmem:[%s3 + $0x190] sm:$0xff]
    %v122 = vld [vmem:[%s3 + $0x198] sm:$0xff]
    %v123 = vld [vmem:[%s3 + $0x1a0] sm:$0xff]
    %v124 = vld [vmem:[%s3 + $0x1a8] sm:$0xff]
    %v125 = vld [vmem:[%s3 + $0x1b0] sm:$0xff]
    %v126 = vld [vmem:[%s3 + $0x1b8] sm:$0xff]
    %v127 = vld [vmem:[%s3 + $0x1c0] sm:$0xff]
    %v128 = vld [vmem:[%s3 + $0x1c8] sm:$0xff]
    %v129 = vld [vmem:[%s3 + $0x1d0] sm:$0xff]
    %v130 = vld [vmem:[%s3 + $0x1d8] sm:$0xff]
    %v131 = vld [vmem:[%s3 + $0x1e0] sm:$0xff]
    %v132 = vld [vmem:[%s3 + $0x1e8] sm:$0xff]
    %v133 = vld [vmem:[%s3 + $0x1f0] sm:$0xff]
    %v134 = vld [vmem:[%s3 + $0x1f8] sm:$0xff]
    %v135 = vld [vmem:[%s3 + $0x200] sm:$0xff]
    %v136 = vld [vmem:[%s3 + $0x208] sm:$0xff]
    %v137 = vld [vmem:[%s3 + $0x210] sm:$0xff]
    %v138 = vld [vmem:[%s3 + $0x218] sm:$0xff]
    %v139 = vld [vmem:[%s3 + $0x220] sm:$0xff]
    %v140 = vld [vmem:[%s3 + $0x228] sm:$0xff]
    %v141 = vld [vmem:[%s3 + $0x230] sm:$0xff]
    %v142 = vld [vmem:[%s3 + $0x238] sm:$0xff]
    %v143 = vld [vmem:[%s3 + $0x240] sm:$0xff]
    %v144 = vld [vmem:[%s3 + $0x248] sm:$0xff]
    %v145 = vld [vmem:[%s3 + $0x250] sm:$0xff]
    %v146 = vld [vmem:[%s3 + $0x258] sm:$0xff]
    %v147 = vld [vmem:[%s3 + $0x260] sm:$0xff]
    %v148 = vld [vmem:[%s3 + $0x268] sm:$0xff]
    %v149 = vld [vmem:[%s3 + $0x270] sm:$0xff]
    %v150 = vld [vmem:[%s3 + $0x278] sm:$0xff]
    %v151 = vld [vmem:[%s3 + $0x280] sm:$0xff]
    %v152 = vld [vmem:[%s3 + $0x288] sm:$0xff]
    %v153 = vld [vmem:[%s3 + $0x290] sm:$0xff]
    %v154 = vld [vmem:[%s3 + $0x298] sm:$0xff]
    %v155 = vld [vmem:[%s3 + $0x2a0] sm:$0xff]
    %v156 = vld [vmem:[%s3 + $0x2a8] sm:$0xff]
    %v157 = vld [vmem:[%s3 + $0x2b0] sm:$0xff]
    %v158 = vld [vmem:[%s3 + $0x2b8] sm:$0xff]
    %v159 = vld [vmem:[%s3 + $0x2c0] sm:$0xff]
    %v160 = vld [vmem:[%s3 + $0x2c8] sm:$0xff]
    %v161 = vld [vmem:[%s3 + $0x2d0] sm:$0xff]
    %v162 = vld [vmem:[%s3 + $0x2d8] sm:$0xff]
    %v163 = vld [vmem:[%s3 + $0x2e0] sm:$0xff]
    %v164 = vld [vmem:[%s3 + $0x2e8] sm:$0xff]
    %v165 = vld [vmem:[%s3 + $0x2f0] sm:$0xff]
    %v166 = vld [vmem:[%s3 + $0x2f8] sm:$0xff]
    %v167 = vld [vmem:[%s3 + $0x300] sm:$0xff]
    %v168 = vld [vmem:[%s3 + $0x308] sm:$0xff]
    %v169 = vld [vmem:[%s3 + $0x310] sm:$0xff]
    %v170 = vld [vmem:[%s3 + $0x318] sm:$0xff]
    %v171 = vld [vmem:[%s3 + $0x320] sm:$0xff]
    %v172 = vld [vmem:[%s3 + $0x328] sm:$0xff]
    %v173 = vld [vmem:[%s3 + $0x330] sm:$0xff]
    %v174 = vld [vmem:[%s3 + $0x338] sm:$0xff]
    %v175 = vld [vmem:[%s3 + $0x340] sm:$0xff]
    %v176 = vld [vmem:[%s3 + $0x348] sm:$0xff]
    %v177 = vld [vmem:[%s3 + $0x350] sm:$0xff]
    %v178 = vld [vmem:[%s3 + $0x358] sm:$0xff]
    %v179 = vld [vmem:[%s3 + $0x360] sm:$0xff]
    %v180 = vld [vmem:[%s3 + $0x368] sm:$0xff]
    %v181 = vld [vmem:[%s3 + $0x370] sm:$0xff]
    %v182 = vld [vmem:[%s3 + $0x378] sm:$0xff]
    %v183 = vld [vmem:[%s3 + $0x380] sm:$0xff]
    %v184 = vld [vmem:[%s3 + $0x388] sm:$0xff]
    %v185 = vld [vmem:[%s3 + $0x390] sm:$0xff]
    %v186 = vld [vmem:[%s3 + $0x398] sm:$0xff]
    %v187 = vld [vmem:[%s3 + $0x3a0] sm:$0xff]
    %v188 = vld [vmem:[%s3 + $0x3a8] sm:$0xff]
    %v189 = vld [vmem:[%s3 + $0x3b0] sm:$0xff]
    %v190 = vld [vmem:[%s3 + $0x3b8] sm:$0xff]
    %v191 = vld [vmem:[%s3 + $0x3c0] sm:$0xff]
    %v192 = vld [vmem:[%s3 + $0x3c8] sm:$0xff]
    %v193 = vld [vmem:[%s3 + $0x3d0] sm:$0xff]
    %v194 = vld [vmem:[%s3 + $0x3d8] sm:$0xff]
    %v195 = vld [vmem:[%s3 + $0x3e0] sm:$0xff]
    %v196 = vld [vmem:[%s3 + $0x3e8] sm:$0xff]
    %v197 = vld [vmem:[%s3 + $0x3f0] sm:$0xff]
    %v198 = vld [vmem:[%s3 + $0x3f8] sm:$0xff]
    %v199 = vld [vmem:[%s3 + $0x400] sm:$0xff]
    %v200 = vld [vmem:[%s3 + $0x408] sm:$0xff]
    %v201 = vld [vmem:[%s3 + $0x410] sm:$0xff]
    %v202 = vld [vmem:[%s3 + $0x418] sm:$0xff]
    %v203 = vld [vmem:[%s3 + $0x420] sm:$0xff]
    %v204 = vld [vmem:[%s3 + $0x428] sm:$0xff]
    %v205 = vld [vmem:[%s3 + $0x430] sm:$0xff]
    %v206 = vld [vmem:[%s3 + $0x438] sm:$0xff]
    %v207 = vld [vmem:[%s3 + $0x440] sm:$0xff]
    %v208 = vld [vmem:[%s3 + $0x448] sm:$0xff]
    %v209 = vld [vmem:[%s3 + $0x450] sm:$0xff]
    %v210 = vld [vmem:[%s3 + $0x458] sm:$0xff]
    %v211 = vld [vmem:[%s3 + $0x460] sm:$0xff]
    %v212 = vld [vmem:[%s3 + $0x468] sm:$0xff]
    %v213 = vld [vmem:[%s3 + $0x470] sm:$0xff]
    %v214 = vld [vmem:[%s3 + $0x478] sm:$0xff]
    %v215 = vld [vmem:[%s3 + $0x480] sm:$0xff]
    %v216 = vld [vmem:[%s3 + $0x488] sm:$0xff]
    %v217 = vld [vmem:[%s3 + $0x490] sm:$0xff]
    %v218 = vld [vmem:[%s3 + $0x498] sm:$0xff]
    %v219 = vld [vmem:[%s3 + $0x4a0] sm:$0xff]
    %v220 = vld [vmem:[%s3 + $0x4a8] sm:$0xff]
    %v221 = vld [vmem:[%s3 + $0x4b0] sm:$0xff]
    %v222 = vld [vmem:[%s3 + $0x4b8] sm:$0xff]
    %v223 = vld [vmem:[%s3 + $0x4c0] sm:$0xff]
    %v224 = vld [vmem:[%s3 + $0x4c8] sm:$0xff]
    %v225 = vld [vmem:[%s3 + $0x4d0] sm:$0xff]
    %v226 = vld [vmem:[%s3 + $0x4d8] sm:$0xff]
    %v227 = vld [vmem:[%s3 + $0x4e0] sm:$0xff]
    %v228 = vld [vmem:[%s3 + $0x4e8] sm:$0xff]
    %v229 = vld [vmem:[%s3 + $0x4f0] sm:$0xff]
    %v230 = vld [vmem:[%s3 + $0x4f8] sm:$0xff]
    %v231 = vld [vmem:[%s3 + $0x500] sm:$0xff]
    %v232 = vld [vmem:[%s3 + $0x508] sm:$0xff]
    %v233 = vld [vmem:[%s3 + $0x510] sm:$0xff]
    %v234 = vld [vmem:[%s3 + $0x518] sm:$0xff]
    %v235 = vld [vmem:[%s3 + $0x520] sm:$0xff]
    %v236 = vld [vmem:[%s3 + $0x528] sm:$0xff]
    %v237 = vld [vmem:[%s3 + $0x530] sm:$0xff]
    %v238 = vld [vmem:[%s3 + $0x538] sm:$0xff]
    %v239 = vld [vmem:[%s3 + $0x540] sm:$0xff]
    %v240 = vld [vmem:[%s3 + $0x548] sm:$0xff]
    %v241 = vld [vmem:[%s3 + $0x550] sm:$0xff]
    %v242 = vld [vmem:[%s3 + $0x558] sm:$0xff]
    %v243 = vld [vmem:[%s3 + $0x560] sm:$0xff]
    %v244 = vld [vmem:[%s3 + $0x568] sm:$0xff]
    %v245 = vld [vmem:[%s3 + $0x570] sm:$0xff]
    %v246 = vld [vmem:[%s3 + $0x578] sm:$0xff]
    %v247 = vld [vmem:[%s3 + $0x580] sm:$0xff]
    %v248 = vld [vmem:[%s3 + $0x588] sm:$0xff]
    %v249 = vld [vmem:[%s3 + $0x590] sm:$0xff]
    %v250 = vld [vmem:[%s3 + $0x598] sm:$0xff]
    %v251 = vld [vmem:[%s3 + $0x5a0] sm:$0xff]
    %v252 = vld [vmem:[%s3 + $0x5a8] sm:$0xff]
    %v253 = vld [vmem:[%s3 + $0x5b0] sm:$0xff]
    %v254 = vld [vmem:[%s3 + $0x5b8] sm:$0xff]
    %v255 = vld [vmem:[%s3 + $0x5c0] sm:$0xff]
    %v256 = vld [vmem:[%s3 + $0x5c8] sm:$0xff]
    %v257 = vld [vmem:[%s3 + $0x5d0] sm:$0xff]
    %v258 = vld [vmem:[%s3 + $0x5d8] sm:$0xff]
    %v259 = vld [vmem:[%s3 + $0x5e0] sm:$0xff]
    %v260 = vld [vmem:[%s3 + $0x5e8] sm:$0xff]
    %v261 = vld [vmem:[%s3 + $0x5f0] sm:$0xff]
    %v262 = vld [vmem:[%s3 + $0x5f8] sm:$0xff]
    %v263 = vld [vmem:[%s3 + $0x600] sm:$0xff]
    %v264 = vld [vmem:[%s3 + $0x608] sm:$0xff]
    %v265 = vld [vmem:[%s3 + $0x610] sm:$0xff]
    %v266 = vld [vmem:[%s3 + $0x618] sm:$0xff]
    %v267 = vld [vmem:[%s3 + $0x620] sm:$0xff]
    %v268 = vld [vmem:[%s3 + $0x628] sm:$0xff]
    %v269 = vld [vmem:[%s3 + $0x630] sm:$0xff]
    %v270 = vld [vmem:[%s3 + $0x638] sm:$0xff]
    %v271 = vld [vmem:[%s3 + $0x640] sm:$0xff]
    %v272 = vld [vmem:[%s3 + $0x648] sm:$0xff]
    %v273 = vld [vmem:[%s3 + $0x650] sm:$0xff]
    %v274 = vld [vmem:[%s3 + $0x658] sm:$0xff]
    %v275 = vld [vmem:[%s3 + $0x660] sm:$0xff]
    %v276 = vld [vmem:[%s3 + $0x668] sm:$0xff]
    %v277 = vld [vmem:[%s3 + $0x670] sm:$0xff]
    %v278 = vld [vmem:[%s3 + $0x678] sm:$0xff]
    %v279 = vld [vmem:[%s3 + $0x680] sm:$0xff]
    %v280 = vld [vmem:[%s3 + $0x688] sm:$0xff]
    %v281 = vld [vmem:[%s3 + $0x690] sm:$0xff]
    %v282 = vld [vmem:[%s3 + $0x698] sm:$0xff]
    %v283 = vld [vmem:[%s3 + $0x6a0] sm:$0xff]
    %v284 = vld [vmem:[%s3 + $0x6a8] sm:$0xff]
    %v285 = vld [vmem:[%s3 + $0x6b0] sm:$0xff]
    %v286 = vld [vmem:[%s3 + $0x6b8] sm:$0xff]
    %v287 = vld [vmem:[%s3 + $0x6c0] sm:$0xff]
    %v288 = vld [vmem:[%s3 + $0x6c8] sm:$0xff]
    %v289 = vld [vmem:[%s3 + $0x6d0] sm:$0xff]
    %v290 = vld [vmem:[%s3 + $0x6d8] sm:$0xff]
    %v291 = vld [vmem:[%s3 + $0x6e0] sm:$0xff]
    %v292 = vld [vmem:[%s3 + $0x6e8] sm:$0xff]
    %v293 = vld [vmem:[%s3 + $0x6f0] sm:$0xff]
    %v294 = vld [vmem:[%s3 + $0x6f8] sm:$0xff]
    %v295 = vld [vmem:[%s3 + $0x700] sm:$0xff]
    %v296 = vld [vmem:[%s3 + $0x708] sm:$0xff]
    %v297 = vld [vmem:[%s3 + $0x710] sm:$0xff]
    %v298 = vld [vmem:[%s3 + $0x718] sm:$0xff]
    %v299 = vld [vmem:[%s3 + $0x720] sm:$0xff]
    %v300 = vld [vmem:[%s3 + $0x728] sm:$0xff]
    %v301 = vld [vmem:[%s3 + $0x730] sm:$0xff]
    %v302 = vld [vmem:[%s3 + $0x738] sm:$0xff]
    %v303 = vld [vmem:[%s3 + $0x740] sm:$0xff]
    %v304 = vld [vmem:[%s3 + $0x748] sm:$0xff]
    %v305 = vld [vmem:[%s3 + $0x750] sm:$0xff]
    %v306 = vld [vmem:[%s3 + $0x758] sm:$0xff]
    %v307 = vld [vmem:[%s3 + $0x760] sm:$0xff]
    %v308 = vld [vmem:[%s3 + $0x768] sm:$0xff]
    %v309 = vld [vmem:[%s3 + $0x770] sm:$0xff]
    %v310 = vld [vmem:[%s3 + $0x778] sm:$0xff]
    %v311 = vld [vmem:[%s3 + $0x780] sm:$0xff]
    %v312 = vld [vmem:[%s3 + $0x788] sm:$0xff]
    %v313 = vld [vmem:[%s3 + $0x790] sm:$0xff]
    %v314 = vld [vmem:[%s3 + $0x798] sm:$0xff]
    %v315 = vld [vmem:[%s3 + $0x7a0] sm:$0xff]
    %v316 = vld [vmem:[%s3 + $0x7a8] sm:$0xff]
    %v317 = vld [vmem:[%s3 + $0x7b0] sm:$0xff]
    %v318 = vld [vmem:[%s3 + $0x7b8] sm:$0xff]
    %v319 = vld [vmem:[%s3 + $0x7c0] sm:$0xff]
    %v320 = vld [vmem:[%s3 + $0x7c8] sm:$0xff]
    %v321 = vld [vmem:[%s3 + $0x7d0] sm:$0xff]
    %v322 = vld [vmem:[%s3 + $0x7d8] sm:$0xff]
    %v323 = vld [vmem:[%s3 + $0x7e0] sm:$0xff]
    %v324 = vld [vmem:[%s3 + $0x7e8] sm:$0xff]
    %v325 = vld [vmem:[%s3 + $0x7f0] sm:$0xff]
    %v326 = vld [vmem:[%s3 + $0x7f8] sm:$0xff]
    %v327 = vld [vmem:[%s3 + $0x800] sm:$0xff]
    %v328 = vld [vmem:[%s3 + $0x808] sm:$0xff]
    %v329 = vld [vmem:[%s3 + $0x810] sm:$0xff]
    %v330 = vld [vmem:[%s3 + $0x818] sm:$0xff]
    %v331 = vld [vmem:[%s3 + $0x820] sm:$0xff]
    %v332 = vld [vmem:[%s3 + $0x828] sm:$0xff]
    %v333 = vld [vmem:[%s3 + $0x830] sm:$0xff]
    %v334 = vld [vmem:[%s3 + $0x838] sm:$0xff]
    %v335 = vld [vmem:[%s3 + $0x840] sm:$0xff]
    %v336 = vld [vmem:[%s3 + $0x848] sm:$0xff]
    %v337 = vld [vmem:[%s3 + $0x850] sm:$0xff]
    %v338 = vld [vmem:[%s3 + $0x858] sm:$0xff]
    %v339 = vld [vmem:[%s3 + $0x860] sm:$0xff]
    %v340 = vld [vmem:[%s3 + $0x868] sm:$0xff]
    %v341 = vld [vmem:[%s3 + $0x870] sm:$0xff]
    %v342 = vld [vmem:[%s3 + $0x878] sm:$0xff]
    %v343 = vld [vmem:[%s3 + $0x880] sm:$0xff]
    %v344 = vld [vmem:[%s3 + $0x888] sm:$0xff]
    %v345 = vld [vmem:[%s3 + $0x890] sm:$0xff]
    %v346 = vld [vmem:[%s3 + $0x898] sm:$0xff]
    %v347 = vld [vmem:[%s3 + $0x8a0] sm:$0xff]
    %v348 = vld [vmem:[%s3 + $0x8a8] sm:$0xff]
    %v349 = vld [vmem:[%s3 + $0x8b0] sm:$0xff]
    %v350 = vld [vmem:[%s3 + $0x8b8] sm:$0xff]
    %v351 = vld [vmem:[%s3 + $0x8c0] sm:$0xff]
    %v352 = vld [vmem:[%s3 + $0x8c8] sm:$0xff]
    %v353 = vld [vmem:[%s3 + $0x8d0] sm:$0xff]
    %v354 = vld [vmem:[%s3 + $0x8d8] sm:$0xff]
    %v355 = vld [vmem:[%s3 + $0x8e0] sm:$0xff]
    %v356 = vld [vmem:[%s3 + $0x8e8] sm:$0xff]
    %v357 = vld [vmem:[%s3 + $0x8f0] sm:$0xff]
    %v358 = vld [vmem:[%s3 + $0x8f8] sm:$0xff]
    %v359 = vld [vmem:[%s3 + $0x900] sm:$0xff]
    %v360 = vld [vmem:[%s3 + $0x908] sm:$0xff]
    %v361 = vld [vmem:[%s3 + $0x910] sm:$0xff]
    %v362 = vld [vmem:[%s3 + $0x918] sm:$0xff]
    %v363 = vld [vmem:[%s3 + $0x920] sm:$0xff]
    %v364 = vld [vmem:[%s3 + $0x928] sm:$0xff]
    %v365 = vld [vmem:[%s3 + $0x930] sm:$0xff]
    %v366 = vld [vmem:[%s3 + $0x938] sm:$0xff]
    %v367 = vld [vmem:[%s3 + $0x940] sm:$0xff]
    %v368 = vld [vmem:[%s3 + $0x948] sm:$0xff]
    %v369 = vld [vmem:[%s3 + $0x950] sm:$0xff]
    %v370 = vld [vmem:[%s3 + $0x958] sm:$0xff]
    %v371 = vld [vmem:[%s3 + $0x960] sm:$0xff]
    %v372 = vld [vmem:[%s3 + $0x968] sm:$0xff]
    %v373 = vld [vmem:[%s3 + $0x970] sm:$0xff]
    %v374 = vld [vmem:[%s3 + $0x978] sm:$0xff]
    %v375 = vld [vmem:[%s3 + $0x980] sm:$0xff]
    %v376 = vld [vmem:[%s3 + $0x988] sm:$0xff]
    %v377 = vld [vmem:[%s3 + $0x990] sm:$0xff]
    %v378 = vld [vmem:[%s3 + $0x998] sm:$0xff]
    %v379 = vld [vmem:[%s3 + $0x9a0] sm:$0xff]
    %v380 = vld [vmem:[%s3 + $0x9a8] sm:$0xff]
    %v381 = vld [vmem:[%s3 + $0x9b0] sm:$0xff]
    %v382 = vld [vmem:[%s3 + $0x9b8] sm:$0xff]
    %v383 = vld [vmem:[%s3 + $0x9c0] sm:$0xff]
    %v384 = vld [vmem:[%s3 + $0x9c8] sm:$0xff]
    %v385 = vld [vmem:[%s3 + $0x9d0] sm:$0xff]
    %v386 = vld [vmem:[%s3 + $0x9d8] sm:$0xff]
    %v387 = vld [vmem:[%s3 + $0x9e0] sm:$0xff]
    %v388 = vld [vmem:[%s3 + $0x9e8] sm:$0xff]
    %v389 = vld [vmem:[%s3 + $0x9f0] sm:$0xff]
    %v390 = vld [vmem:[%s3 + $0x9f8] sm:$0xff]
    %v391 = vld [vmem:[%s3 + $0xa00] sm:$0xff]
    %v392 = vld [vmem:[%s3 + $0xa08] sm:$0xff]
    %v393 = vld [vmem:[%s3 + $0xa10] sm:$0xff]
    %v394 = vld [vmem:[%s3 + $0xa18] sm:$0xff]
    %v395 = vld [vmem:[%s3 + $0xa20] sm:$0xff]
    %v396 = vld [vmem:[%s3 + $0xa28] sm:$0xff]
    %v397 = vld [vmem:[%s3 + $0xa30] sm:$0xff]
    %v398 = vld [vmem:[%s3 + $0xa38] sm:$0xff]
    %v399 = vld [vmem:[%s3 + $0xa40] sm:$0xff]
    %v400 = vld [vmem:[%s3 + $0xa48] sm:$0xff]
    %v401 = vld [vmem:[%s3 + $0xa50] sm:$0xff]
    %v402 = vld [vmem:[%s3 + $0xa58] sm:$0xff]
    %v403 = vld [vmem:[%s3 + $0xa60] sm:$0xff]
    %v404 = vld [vmem:[%s3 + $0xa68] sm:$0xff]
    %v405 = vld [vmem:[%s3 + $0xa70] sm:$0xff]
    %v406 = vld [vmem:[%s3 + $0xa78] sm:$0xff]
    %v407 = vld [vmem:[%s3 + $0xa80] sm:$0xff]
    %v408 = vld [vmem:[%s3 + $0xa88] sm:$0xff]
    %v409 = vld [vmem:[%s3 + $0xa90] sm:$0xff]
    %v410 = vld [vmem:[%s3 + $0xa98] sm:$0xff]
    %v411 = vld [vmem:[%s3 + $0xaa0] sm:$0xff]
    %v412 = vld [vmem:[%s3 + $0xaa8] sm:$0xff]
    %v413 = vld [vmem:[%s3 + $0xab0] sm:$0xff]
    %v414 = vld [vmem:[%s3 + $0xab8] sm:$0xff]
    %v415 = vld [vmem:[%s3 + $0xac0] sm:$0xff]
    %v416 = vld [vmem:[%s3 + $0xac8] sm:$0xff]
    %v417 = vld [vmem:[%s3 + $0xad0] sm:$0xff]
    %v418 = vld [vmem:[%s3 + $0xad8] sm:$0xff]
    %v419 = vld [vmem:[%s3 + $0xae0] sm:$0xff]
    %v420 = vld [vmem:[%s3 + $0xae8] sm:$0xff]
    %v421 = vld [vmem:[%s3 + $0xaf0] sm:$0xff]
    %v422 = vld [vmem:[%s3 + $0xaf8] sm:$0xff]
    %v423 = vld [vmem:[%s3 + $0xb00] sm:$0xff]
    %v424 = vld [vmem:[%s3 + $0xb08] sm:$0xff]
    %v425 = vld [vmem:[%s3 + $0xb10] sm:$0xff]
    %v426 = vld [vmem:[%s3 + $0xb18] sm:$0xff]
    %v427 = vld [vmem:[%s3 + $0xb20] sm:$0xff]
    %v428 = vld [vmem:[%s3 + $0xb28] sm:$0xff]
    %v429 = vld [vmem:[%s3 + $0xb30] sm:$0xff]
    %v430 = vld [vmem:[%s3 + $0xb38] sm:$0xff]
    %v431 = vld [vmem:[%s3 + $0xb40] sm:$0xff]
    %v432 = vld [vmem:[%s3 + $0xb48] sm:$0xff]
    %v433 = vld [vmem:[%s3 + $0xb50] sm:$0xff]
    %v434 = vld [vmem:[%s3 + $0xb58] sm:$0xff]
    %v435 = vld [vmem:[%s3 + $0xb60] sm:$0xff]
    %v436 = vld [vmem:[%s3 + $0xb68] sm:$0xff]
    %v437 = vld [vmem:[%s3 + $0xb70] sm:$0xff]
    %v438 = vld [vmem:[%s3 + $0xb78] sm:$0xff]
    %v439 = vld [vmem:[%s3 + $0xb80] sm:$0xff]
    %v440 = vld [vmem:[%s3 + $0xb88] sm:$0xff]
    %v441 = vld [vmem:[%s3 + $0xb90] sm:$0xff]
    %v442 = vld [vmem:[%s3 + $0xb98] sm:$0xff]
    %v443 = vld [vmem:[%s3 + $0xba0] sm:$0xff]
    %v444 = vld [vmem:[%s3 + $0xba8] sm:$0xff]
    %v445 = vld [vmem:[%s3 + $0xbb0] sm:$0xff]
    %v446 = vld [vmem:[%s3 + $0xbb8] sm:$0xff]
    %v447 = vld [vmem:[%s3 + $0xbc0] sm:$0xff]
    %v448 = vld [vmem:[%s3 + $0xbc8] sm:$0xff]
    %v449 = vld [vmem:[%s3 + $0xbd0] sm:$0xff]
    %v450 = vld [vmem:[%s3 + $0xbd8] sm:$0xff]
    %v451 = vld [vmem:[%s3 + $0xbe0] sm:$0xff]
    %v452 = vld [vmem:[%s3 + $0xbe8] sm:$0xff]
    %v453 = vld [vmem:[%s3 + $0xbf0] sm:$0xff]
    %v454 = vld [vmem:[%s3 + $0xbf8] sm:$0xff]
    %v455 = vld [vmem:[%s3 + $0xc00] sm:$0xff]
    %v456 = vld [vmem:[%s3 + $0xc08] sm:$0xff]
    %v457 = vld [vmem:[%s3 + $0xc10] sm:$0xff]
    %v458 = vld [vmem:[%s3 + $0xc18] sm:$0xff]
    %v459 = vld [vmem:[%s3 + $0xc20] sm:$0xff]
    %v460 = vld [vmem:[%s3 + $0xc28] sm:$0xff]
    %v461 = vld [vmem:[%s3 + $0xc30] sm:$0xff]
    %v462 = vld [vmem:[%s3 + $0xc38] sm:$0xff]
    %v463 = vld [vmem:[%s3 + $0xc40] sm:$0xff]
    %v464 = vld [vmem:[%s3 + $0xc48] sm:$0xff]
    %v465 = vld [vmem:[%s3 + $0xc50] sm:$0xff]
    %v466 = vld [vmem:[%s3 + $0xc58] sm:$0xff]
    %v467 = vld [vmem:[%s3 + $0xc60] sm:$0xff]
    %v468 = vld [vmem:[%s3 + $0xc68] sm:$0xff]
    %v469 = vld [vmem:[%s3 + $0xc70] sm:$0xff]
    %v470 = vld [vmem:[%s3 + $0xc78] sm:$0xff]
    %v471 = vld [vmem:[%s3 + $0xc80] sm:$0xff]
    %v472 = vld [vmem:[%s3 + $0xc88] sm:$0xff]
    %v473 = vld [vmem:[%s3 + $0xc90] sm:$0xff]
    %v474 = vld [vmem:[%s3 + $0xc98] sm:$0xff]
    %v475 = vld [vmem:[%s3 + $0xca0] sm:$0xff]
    %v476 = vld [vmem:[%s3 + $0xca8] sm:$0xff]
    %v477 = vld [vmem:[%s3 + $0xcb0] sm:$0xff]
    %v478 = vld [vmem:[%s3 + $0xcb8] sm:$0xff]
    %v479 = vld [vmem:[%s3 + $0xcc0] sm:$0xff]
    %v480 = vld [vmem:[%s3 + $0xcc8] sm:$0xff]
    %v481 = vld [vmem:[%s3 + $0xcd0] sm:$0xff]
    %v482 = vld [vmem:[%s3 + $0xcd8] sm:$0xff]
    %v483 = vld [vmem:[%s3 + $0xce0] sm:$0xff]
    %v484 = vld [vmem:[%s3 + $0xce8] sm:$0xff]
    %v485 = vld [vmem:[%s3 + $0xcf0] sm:$0xff]
    %v486 = vld [vmem:[%s3 + $0xcf8] sm:$0xff]
    %v487 = vld [vmem:[%s3 + $0xd00] sm:$0xff]
    %v488 = vld [vmem:[%s3 + $0xd08] sm:$0xff]
    %v489 = vld [vmem:[%s3 + $0xd10] sm:$0xff]
    %v490 = vld [vmem:[%s3 + $0xd18] sm:$0xff]
    %v491 = vld [vmem:[%s3 + $0xd20] sm:$0xff]
    %v492 = vld [vmem:[%s3 + $0xd28] sm:$0xff]
    %v493 = vld [vmem:[%s3 + $0xd30] sm:$0xff]
    %v494 = vld [vmem:[%s3 + $0xd38] sm:$0xff]
    %v495 = vld [vmem:[%s3 + $0xd40] sm:$0xff]
    %v496 = vld [vmem:[%s3 + $0xd48] sm:$0xff]
    %v497 = vld [vmem:[%s3 + $0xd50] sm:$0xff]
    %v498 = vld [vmem:[%s3 + $0xd58] sm:$0xff]
    %v499 = vld [vmem:[%s3 + $0xd60] sm:$0xff]
    %v500 = vld [vmem:[%s3 + $0xd68] sm:$0xff]
    %v501 = vld [vmem:[%s3 + $0xd70] sm:$0xff]
    %v502 = vld [vmem:[%s3 + $0xd78] sm:$0xff]
    %v503 = vld [vmem:[%s3 + $0xd80] sm:$0xff]
    %v504 = vld [vmem:[%s3 + $0xd88] sm:$0xff]
    %v505 = vld [vmem:[%s3 + $0xd90] sm:$0xff]
    %v506 = vld [vmem:[%s3 + $0xd98] sm:$0xff]
    %v507 = vld [vmem:[%s3 + $0xda0] sm:$0xff]
    %v508 = vld [vmem:[%s3 + $0xda8] sm:$0xff]
    %v509 = vld [vmem:[%s3 + $0xdb0] sm:$0xff]
    %v510 = vld [vmem:[%s3 + $0xdb8] sm:$0xff]
    %v511 = vld [vmem:[%s3 + $0xdc0] sm:$0xff]
    %v512 = vld [vmem:[%s3 + $0xdc8] sm:$0xff]
    %v513 = vld [vmem:[%s3 + $0xdd0] sm:$0xff]
    %v514 = vld [vmem:[%s3 + $0xdd8] sm:$0xff]
    %v515 = vld [vmem:[%s3 + $0xde0] sm:$0xff]
    %v516 = vld [vmem:[%s3 + $0xde8] sm:$0xff]
    %v517 = vld [vmem:[%s3 + $0xdf0] sm:$0xff]
    %v518 = vld [vmem:[%s3 + $0xdf8] sm:$0xff]
    %v519 = vld [vmem:[%s3 + $0xe00] sm:$0xff]
    %v520 = vld [vmem:[%s3 + $0xe08] sm:$0xff]
    %v521 = vld [vmem:[%s3 + $0xe10] sm:$0xff]
    %v522 = vld [vmem:[%s3 + $0xe18] sm:$0xff]
    %v523 = vld [vmem:[%s3 + $0xe20] sm:$0xff]
    %v524 = vld [vmem:[%s3 + $0xe28] sm:$0xff]
    %v525 = vld [vmem:[%s3 + $0xe30] sm:$0xff]
    %v526 = vld [vmem:[%s3 + $0xe38] sm:$0xff]
    %v527 = vld [vmem:[%s3 + $0xe40] sm:$0xff]
    %v528 = vld [vmem:[%s3 + $0xe48] sm:$0xff]
    %v529 = vld [vmem:[%s3 + $0xe50] sm:$0xff]
    %v530 = vld [vmem:[%s3 + $0xe58] sm:$0xff]
    %v531 = vld [vmem:[%s3 + $0xe60] sm:$0xff]
    %v532 = vld [vmem:[%s3 + $0xe68] sm:$0xff]
    %v533 = vld [vmem:[%s3 + $0xe70] sm:$0xff]
    %v534 = vld [vmem:[%s3 + $0xe78] sm:$0xff]
    %v535 = vld [vmem:[%s3 + $0xe80] sm:$0xff]
    %v536 = vld [vmem:[%s3 + $0xe88] sm:$0xff]
    %v537 = vld [vmem:[%s3 + $0xe90] sm:$0xff]
    %v538 = vld [vmem:[%s3 + $0xe98] sm:$0xff]
    %v539 = vld [vmem:[%s3 + $0xea0] sm:$0xff]
    %v540 = vld [vmem:[%s3 + $0xea8] sm:$0xff]
    %v541 = vld [vmem:[%s3 + $0xeb0] sm:$0xff]
    %v542 = vld [vmem:[%s3 + $0xeb8] sm:$0xff]
    %v543 = vld [vmem:[%s3 + $0xec0] sm:$0xff]
    %v544 = vld [vmem:[%s3 + $0xec8] sm:$0xff]
    %v545 = vld [vmem:[%s3 + $0xed0] sm:$0xff]
    %v546 = vld [vmem:[%s3 + $0xed8] sm:$0xff]
    %v547 = vld [vmem:[%s3 + $0xee0] sm:$0xff]
    %v548 = vld [vmem:[%s3 + $0xee8] sm:$0xff]
    %v549 = vld [vmem:[%s3 + $0xef0] sm:$0xff]
    %v550 = vld [vmem:[%s3 + $0xef8] sm:$0xff]
    %v551 = vld [vmem:[%s3 + $0xf00] sm:$0xff]
    %v552 = vld [vmem:[%s3 + $0xf08] sm:$0xff]
    %v553 = vld [vmem:[%s3 + $0xf10] sm:$0xff]
    %v554 = vld [vmem:[%s3 + $0xf18] sm:$0xff]
    %v555 = vld [vmem:[%s3 + $0xf20] sm:$0xff]
    %v556 = vld [vmem:[%s3 + $0xf28] sm:$0xff]
    %v557 = vld [vmem:[%s3 + $0xf30] sm:$0xff]
    %v558 = vld [vmem:[%s3 + $0xf38] sm:$0xff]
    %v559 = vld [vmem:[%s3 + $0xf40] sm:$0xff]
    %v560 = vld [vmem:[%s3 + $0xf48] sm:$0xff]
    %v561 = vld [vmem:[%s3 + $0xf50] sm:$0xff]
    %v562 = vld [vmem:[%s3 + $0xf58] sm:$0xff]
    %v563 = vld [vmem:[%s3 + $0xf60] sm:$0xff]
    %v564 = vld [vmem:[%s3 + $0xf68] sm:$0xff]
    %v565 = vld [vmem:[%s3 + $0xf70] sm:$0xff]
    %v566 = vld [vmem:[%s3 + $0xf78] sm:$0xff]
    %v567 = vld [vmem:[%s3 + $0xf80] sm:$0xff]
    %v568 = vld [vmem:[%s3 + $0xf88] sm:$0xff]
    %v569 = vld [vmem:[%s3 + $0xf90] sm:$0xff]
    %v570 = vld [vmem:[%s3 + $0xf98] sm:$0xff]
    %v571 = vld [vmem:[%s3 + $0xfa0] sm:$0xff]
    %v572 = vld [vmem:[%s3 + $0xfa8] sm:$0xff]
    %v573 = vld [vmem:[%s3 + $0xfb0] sm:$0xff]
    %v574 = vld [vmem:[%s3 + $0xfb8] sm:$0xff]
    %v575 = vld [vmem:[%s3 + $0xfc0] sm:$0xff]
    %v576 = vld [vmem:[%s3 + $0xfc8] sm:$0xff]
    %v577 = vld [vmem:[%s3 + $0xfd0] sm:$0xff]
    %v578 = vld [vmem:[%s3 + $0xfd8] sm:$0xff]
    %v579 = vld [vmem:[%s3 + $0xfe0] sm:$0xff]
    %v580 = vld [vmem:[%s3 + $0xfe8] sm:$0xff]
    %v581 = vld [vmem:[%s3 + $0xff0] sm:$0xff]
    %v582 = vld [vmem:[%s3 + $0xff8] sm:$0xff]
    %v583 = vld [vmem:[%s4] sm:$0xf]
    %v585 = vperm.slane %v583, 0
    %v586 = vperm.slane %v583, 1
    %v587 = vperm.slane %v583, 2
    %v588 = vperm.slane %v583, 3
    %593 = vmatpush.msra.mxu0 %v131
    %594 = vmatpush.msra.mxu0 %v127
    %595 = vmatpush.msra.mxu0 %v123
    %596 = vmatpush.msra.mxu0 %v119
    %597 = vmatpush.msra.mxu0 %v115
    %598 = vmatpush.msra.mxu0 %v111
    %599 = vmatpush.msra.mxu0 %v107
    %600 = vmatpush.msra.mxu0 %v103
    %601 = vmatpush.msra.mxu0 %v99
    %602 = vmatpush.msra.mxu0 %v95
    %603 = vmatpush.msra.mxu0 %v91
    %604 = vmatpush.msra.mxu0 %v87
    %605 = vmatpush.msra.mxu0 %v83
    %606 = vmatpush.msra.mxu0 %v79
    %607 = vmatpush.msra.mxu0 %v75
    %608 = vmatpush.msra.mxu0 %v71
    %609 = vmatmul.f32.gmra.mxu0 %v62
    %v610 = vpop.f32.mrf.mxu0
    %v611 = vadd.f32 %v585, %v610
    %612 = vdwg.mxu0
    %613 = vmatpush.msra.mxu0 %v195
    %614 = vmatpush.msra.mxu0 %v191
    %615 = vmatpush.msra.mxu0 %v187
    %616 = vmatpush.msra.mxu0 %v183
    %617 = vmatpush.msra.mxu0 %v179
    %618 = vmatpush.msra.mxu0 %v175
    %619 = vmatpush.msra.mxu0 %v171
    %620 = vmatpush.msra.mxu0 %v167
    %621 = vmatpush.msra.mxu0 %v163
    %622 = vmatpush.msra.mxu0 %v159
    %623 = vmatpush.msra.mxu0 %v155
    %624 = vmatpush.msra.mxu0 %v151
    %625 = vmatpush.msra.mxu0 %v147
    %626 = vmatpush.msra.mxu0 %v143
    %627 = vmatpush.msra.mxu0 %v139
    %628 = vmatpush.msra.mxu0 %v135
    %629 = vmatmul.f32.gmra.mxu0 %v63
    %v630 = vpop.f32.mrf.mxu0
    %v631 = vadd.f32 %v611, %v630
    %632 = vdwg.mxu0
    %633 = vmatpush.msra.mxu0 %v259
    %634 = vmatpush.msra.mxu0 %v255
    %635 = vmatpush.msra.mxu0 %v251
    %636 = vmatpush.msra.mxu0 %v247
    %637 = vmatpush.msra.mxu0 %v243
    %638 = vmatpush.msra.mxu0 %v239
    %639 = vmatpush.msra.mxu0 %v235
    %640 = vmatpush.msra.mxu0 %v231
    %641 = vmatpush.msra.mxu0 %v227
    %642 = vmatpush.msra.mxu0 %v223
    %643 = vmatpush.msra.mxu0 %v219
    %644 = vmatpush.msra.mxu0 %v215
    %645 = vmatpush.msra.mxu0 %v211
    %646 = vmatpush.msra.mxu0 %v207
    %647 = vmatpush.msra.mxu0 %v203
    %648 = vmatpush.msra.mxu0 %v199
    %649 = vmatmul.f32.gmra.mxu0 %v64
    %v650 = vpop.f32.mrf.mxu0
    %v651 = vadd.f32 %v631, %v650
    %652 = vdwg.mxu0
    %653 = vmatpush.msra.mxu0 %v323
    %654 = vmatpush.msra.mxu0 %v319
    %655 = vmatpush.msra.mxu0 %v315
    %656 = vmatpush.msra.mxu0 %v311
    %657 = vmatpush.msra.mxu0 %v307
    %658 = vmatpush.msra.mxu0 %v303
    %659 = vmatpush.msra.mxu0 %v299
    %660 = vmatpush.msra.mxu0 %v295
    %661 = vmatpush.msra.mxu0 %v291
    %662 = vmatpush.msra.mxu0 %v287
    %663 = vmatpush.msra.mxu0 %v283
    %664 = vmatpush.msra.mxu0 %v279
    %665 = vmatpush.msra.mxu0 %v275
    %666 = vmatpush.msra.mxu0 %v271
    %667 = vmatpush.msra.mxu0 %v267
    %668 = vmatpush.msra.mxu0 %v263
    %669 = vmatmul.f32.gmra.mxu0 %v65
    %v670 = vpop.f32.mrf.mxu0
    %v671 = vadd.f32 %v651, %v670
    %672 = vdwg.mxu0
    %673 = vmatpush.msra.mxu0 %v387
    %674 = vmatpush.msra.mxu0 %v383
    %675 = vmatpush.msra.mxu0 %v379
    %676 = vmatpush.msra.mxu0 %v375
    %677 = vmatpush.msra.mxu0 %v371
    %678 = vmatpush.msra.mxu0 %v367
    %679 = vmatpush.msra.mxu0 %v363
    %680 = vmatpush.msra.mxu0 %v359
    %681 = vmatpush.msra.mxu0 %v355
    %682 = vmatpush.msra.mxu0 %v351
    %683 = vmatpush.msra.mxu0 %v347
    %684 = vmatpush.msra.mxu0 %v343
    %685 = vmatpush.msra.mxu0 %v339
    %686 = vmatpush.msra.mxu0 %v335
    %687 = vmatpush.msra.mxu0 %v331
    %688 = vmatpush.msra.mxu0 %v327
    %689 = vmatmul.f32.gmra.mxu0 %v66
    %v690 = vpop.f32.mrf.mxu0
    %v691 = vadd.f32 %v671, %v690
    %692 = vdwg.mxu0
    %693 = vmatpush.msra.mxu0 %v451
    %694 = vmatpush.msra.mxu0 %v447
    %695 = vmatpush.msra.mxu0 %v443
    %696 = vmatpush.msra.mxu0 %v439
    %697 = vmatpush.msra.mxu0 %v435
    %698 = vmatpush.msra.mxu0 %v431
    %699 = vmatpush.msra.mxu0 %v427
    %700 = vmatpush.msra.mxu0 %v423
    %701 = vmatpush.msra.mxu0 %v419
    %702 = vmatpush.msra.mxu0 %v415
    %703 = vmatpush.msra.mxu0 %v411
    %704 = vmatpush.msra.mxu0 %v407
    %705 = vmatpush.msra.mxu0 %v403
    %706 = vmatpush.msra.mxu0 %v399
    %707 = vmatpush.msra.mxu0 %v395
    %708 = vmatpush.msra.mxu0 %v391
    %709 = vmatmul.f32.gmra.mxu0 %v67
    %v710 = vpop.f32.mrf.mxu0
    %v711 = vadd.f32 %v691, %v710
    %712 = vdwg.mxu0
    %713 = vmatpush.msra.mxu0 %v515
    %714 = vmatpush.msra.mxu0 %v511
    %715 = vmatpush.msra.mxu0 %v507
    %716 = vmatpush.msra.mxu0 %v503
    %717 = vmatpush.msra.mxu0 %v499
    %718 = vmatpush.msra.mxu0 %v495
    %719 = vmatpush.msra.mxu0 %v491
    %720 = vmatpush.msra.mxu0 %v487
    %721 = vmatpush.msra.mxu0 %v483
    %722 = vmatpush.msra.mxu0 %v479
    %723 = vmatpush.msra.mxu0 %v475
    %724 = vmatpush.msra.mxu0 %v471
    %725 = vmatpush.msra.mxu0 %v467
    %726 = vmatpush.msra.mxu0 %v463
    %727 = vmatpush.msra.mxu0 %v459
    %728 = vmatpush.msra.mxu0 %v455
    %729 = vmatmul.f32.gmra.mxu0 %v68
    %v730 = vpop.f32.mrf.mxu0
    %v731 = vadd.f32 %v711, %v730
    %732 = vdwg.mxu0
    %733 = vmatpush.msra.mxu0 %v579
    %734 = vmatpush.msra.mxu0 %v575
    %735 = vmatpush.msra.mxu0 %v571
    %736 = vmatpush.msra.mxu0 %v567
    %737 = vmatpush.msra.mxu0 %v563
    %738 = vmatpush.msra.mxu0 %v559
    %739 = vmatpush.msra.mxu0 %v555
    %740 = vmatpush.msra.mxu0 %v551
    %741 = vmatpush.msra.mxu0 %v547
    %742 = vmatpush.msra.mxu0 %v543
    %743 = vmatpush.msra.mxu0 %v539
    %744 = vmatpush.msra.mxu0 %v535
    %745 = vmatpush.msra.mxu0 %v531
    %746 = vmatpush.msra.mxu0 %v527
    %747 = vmatpush.msra.mxu0 %v523
    %748 = vmatpush.msra.mxu0 %v519
    %749 = vmatmul.f32.gmra.mxu0 %v69
    %v750 = vpop.f32.mrf.mxu0
    %v751 = vadd.f32 %v731, %v750
    %752 = vdwg.mxu0
    %753 = vmatpush.msra.mxu0 %v132
    %754 = vmatpush.msra.mxu0 %v128
    %755 = vmatpush.msra.mxu0 %v124
    %756 = vmatpush.msra.mxu0 %v120
    %757 = vmatpush.msra.mxu0 %v116
    %758 = vmatpush.msra.mxu0 %v112
    %759 = vmatpush.msra.mxu0 %v108
    %760 = vmatpush.msra.mxu0 %v104
    %761 = vmatpush.msra.mxu0 %v100
    %762 = vmatpush.msra.mxu0 %v96
    %763 = vmatpush.msra.mxu0 %v92
    %764 = vmatpush.msra.mxu0 %v88
    %765 = vmatpush.msra.mxu0 %v84
    %766 = vmatpush.msra.mxu0 %v80
    %767 = vmatpush.msra.mxu0 %v76
    %768 = vmatpush.msra.mxu0 %v72
    %769 = vmatmul.f32.gmra.mxu0 %v62
    %v770 = vpop.f32.mrf.mxu0
    %v771 = vadd.f32 %v586, %v770
    %772 = vdwg.mxu0
    %773 = vmatpush.msra.mxu0 %v196
    %774 = vmatpush.msra.mxu0 %v192
    %775 = vmatpush.msra.mxu0 %v188
    %776 = vmatpush.msra.mxu0 %v184
    %777 = vmatpush.msra.mxu0 %v180
    %778 = vmatpush.msra.mxu0 %v176
    %779 = vmatpush.msra.mxu0 %v172
    %780 = vmatpush.msra.mxu0 %v168
    %781 = vmatpush.msra.mxu0 %v164
    %782 = vmatpush.msra.mxu0 %v160
    %783 = vmatpush.msra.mxu0 %v156
    %784 = vmatpush.msra.mxu0 %v152
    %785 = vmatpush.msra.mxu0 %v148
    %786 = vmatpush.msra.mxu0 %v144
    %787 = vmatpush.msra.mxu0 %v140
    %788 = vmatpush.msra.mxu0 %v136
    %789 = vmatmul.f32.gmra.mxu0 %v63
    %v790 = vpop.f32.mrf.mxu0
    %v791 = vadd.f32 %v771, %v790
    %792 = vdwg.mxu0
    %793 = vmatpush.msra.mxu0 %v260
    %794 = vmatpush.msra.mxu0 %v256
    %795 = vmatpush.msra.mxu0 %v252
    %796 = vmatpush.msra.mxu0 %v248
    %797 = vmatpush.msra.mxu0 %v244
    %798 = vmatpush.msra.mxu0 %v240
    %799 = vmatpush.msra.mxu0 %v236
    %800 = vmatpush.msra.mxu0 %v232
    %801 = vmatpush.msra.mxu0 %v228
    %802 = vmatpush.msra.mxu0 %v224
    %803 = vmatpush.msra.mxu0 %v220
    %804 = vmatpush.msra.mxu0 %v216
    %805 = vmatpush.msra.mxu0 %v212
    %806 = vmatpush.msra.mxu0 %v208
    %807 = vmatpush.msra.mxu0 %v204
    %808 = vmatpush.msra.mxu0 %v200
    %809 = vmatmul.f32.gmra.mxu0 %v64
    %v810 = vpop.f32.mrf.mxu0
    %v811 = vadd.f32 %v791, %v810
    %812 = vdwg.mxu0
    %813 = vmatpush.msra.mxu0 %v324
    %814 = vmatpush.msra.mxu0 %v320
    %815 = vmatpush.msra.mxu0 %v316
    %816 = vmatpush.msra.mxu0 %v312
    %817 = vmatpush.msra.mxu0 %v308
    %818 = vmatpush.msra.mxu0 %v304
    %819 = vmatpush.msra.mxu0 %v300
    %820 = vmatpush.msra.mxu0 %v296
    %821 = vmatpush.msra.mxu0 %v292
    %822 = vmatpush.msra.mxu0 %v288
    %823 = vmatpush.msra.mxu0 %v284
    %824 = vmatpush.msra.mxu0 %v280
    %825 = vmatpush.msra.mxu0 %v276
    %826 = vmatpush.msra.mxu0 %v272
    %827 = vmatpush.msra.mxu0 %v268
    %828 = vmatpush.msra.mxu0 %v264
    %829 = vmatmul.f32.gmra.mxu0 %v65
    %v830 = vpop.f32.mrf.mxu0
    %v831 = vadd.f32 %v811, %v830
    %832 = vdwg.mxu0
    %833 = vmatpush.msra.mxu0 %v388
    %834 = vmatpush.msra.mxu0 %v384
    %835 = vmatpush.msra.mxu0 %v380
    %836 = vmatpush.msra.mxu0 %v376
    %837 = vmatpush.msra.mxu0 %v372
    %838 = vmatpush.msra.mxu0 %v368
    %839 = vmatpush.msra.mxu0 %v364
    %840 = vmatpush.msra.mxu0 %v360
    %841 = vmatpush.msra.mxu0 %v356
    %842 = vmatpush.msra.mxu0 %v352
    %843 = vmatpush.msra.mxu0 %v348
    %844 = vmatpush.msra.mxu0 %v344
    %845 = vmatpush.msra.mxu0 %v340
    %846 = vmatpush.msra.mxu0 %v336
    %847 = vmatpush.msra.mxu0 %v332
    %848 = vmatpush.msra.mxu0 %v328
    %849 = vmatmul.f32.gmra.mxu0 %v66
    %v850 = vpop.f32.mrf.mxu0
    %v851 = vadd.f32 %v831, %v850
    %852 = vdwg.mxu0
    %853 = vmatpush.msra.mxu0 %v452
    %854 = vmatpush.msra.mxu0 %v448
    %855 = vmatpush.msra.mxu0 %v444
    %856 = vmatpush.msra.mxu0 %v440
    %857 = vmatpush.msra.mxu0 %v436
    %858 = vmatpush.msra.mxu0 %v432
    %859 = vmatpush.msra.mxu0 %v428
    %860 = vmatpush.msra.mxu0 %v424
    %861 = vmatpush.msra.mxu0 %v420
    %862 = vmatpush.msra.mxu0 %v416
    %863 = vmatpush.msra.mxu0 %v412
    %864 = vmatpush.msra.mxu0 %v408
    %865 = vmatpush.msra.mxu0 %v404
    %866 = vmatpush.msra.mxu0 %v400
    %867 = vmatpush.msra.mxu0 %v396
    %868 = vmatpush.msra.mxu0 %v392
    %869 = vmatmul.f32.gmra.mxu0 %v67
    %v870 = vpop.f32.mrf.mxu0
    %v871 = vadd.f32 %v851, %v870
    %872 = vdwg.mxu0
    %873 = vmatpush.msra.mxu0 %v516
    %874 = vmatpush.msra.mxu0 %v512
    %875 = vmatpush.msra.mxu0 %v508
    %876 = vmatpush.msra.mxu0 %v504
    %877 = vmatpush.msra.mxu0 %v500
    %878 = vmatpush.msra.mxu0 %v496
    %879 = vmatpush.msra.mxu0 %v492
    %880 = vmatpush.msra.mxu0 %v488
    %881 = vmatpush.msra.mxu0 %v484
    %882 = vmatpush.msra.mxu0 %v480
    %883 = vmatpush.msra.mxu0 %v476
    %884 = vmatpush.msra.mxu0 %v472
    %885 = vmatpush.msra.mxu0 %v468
    %886 = vmatpush.msra.mxu0 %v464
    %887 = vmatpush.msra.mxu0 %v460
    %888 = vmatpush.msra.mxu0 %v456
    %889 = vmatmul.f32.gmra.mxu0 %v68
    %v890 = vpop.f32.mrf.mxu0
    %v891 = vadd.f32 %v871, %v890
    %892 = vdwg.mxu0
    %893 = vmatpush.msra.mxu0 %v580
    %894 = vmatpush.msra.mxu0 %v576
    %895 = vmatpush.msra.mxu0 %v572
    %896 = vmatpush.msra.mxu0 %v568
    %897 = vmatpush.msra.mxu0 %v564
    %898 = vmatpush.msra.mxu0 %v560
    %899 = vmatpush.msra.mxu0 %v556
    %900 = vmatpush.msra.mxu0 %v552
    %901 = vmatpush.msra.mxu0 %v548
    %902 = vmatpush.msra.mxu0 %v544
    %903 = vmatpush.msra.mxu0 %v540
    %904 = vmatpush.msra.mxu0 %v536
    %905 = vmatpush.msra.mxu0 %v532
    %906 = vmatpush.msra.mxu0 %v528
    %907 = vmatpush.msra.mxu0 %v524
    %908 = vmatpush.msra.mxu0 %v520
    %909 = vmatmul.f32.gmra.mxu0 %v69
    %v910 = vpop.f32.mrf.mxu0
    %v911 = vadd.f32 %v891, %v910
    %912 = vdwg.mxu0
    %913 = vmatpush.msra.mxu0 %v133
    %914 = vmatpush.msra.mxu0 %v129
    %915 = vmatpush.msra.mxu0 %v125
    %916 = vmatpush.msra.mxu0 %v121
    %917 = vmatpush.msra.mxu0 %v117
    %918 = vmatpush.msra.mxu0 %v113
    %919 = vmatpush.msra.mxu0 %v109
    %920 = vmatpush.msra.mxu0 %v105
    %921 = vmatpush.msra.mxu0 %v101
    %922 = vmatpush.msra.mxu0 %v97
    %923 = vmatpush.msra.mxu0 %v93
    %924 = vmatpush.msra.mxu0 %v89
    %925 = vmatpush.msra.mxu0 %v85
    %926 = vmatpush.msra.mxu0 %v81
    %927 = vmatpush.msra.mxu0 %v77
    %928 = vmatpush.msra.mxu0 %v73
    %929 = vmatmul.f32.gmra.mxu0 %v62
    %v930 = vpop.f32.mrf.mxu0
    %v931 = vadd.f32 %v587, %v930
    %932 = vdwg.mxu0
    %933 = vmatpush.msra.mxu0 %v197
    %934 = vmatpush.msra.mxu0 %v193
    %935 = vmatpush.msra.mxu0 %v189
    %936 = vmatpush.msra.mxu0 %v185
    %937 = vmatpush.msra.mxu0 %v181
    %938 = vmatpush.msra.mxu0 %v177
    %939 = vmatpush.msra.mxu0 %v173
    %940 = vmatpush.msra.mxu0 %v169
    %941 = vmatpush.msra.mxu0 %v165
    %942 = vmatpush.msra.mxu0 %v161
    %943 = vmatpush.msra.mxu0 %v157
    %944 = vmatpush.msra.mxu0 %v153
    %945 = vmatpush.msra.mxu0 %v149
    %946 = vmatpush.msra.mxu0 %v145
    %947 = vmatpush.msra.mxu0 %v141
    %948 = vmatpush.msra.mxu0 %v137
    %949 = vmatmul.f32.gmra.mxu0 %v63
    %v950 = vpop.f32.mrf.mxu0
    %v951 = vadd.f32 %v931, %v950
    %952 = vdwg.mxu0
    %953 = vmatpush.msra.mxu0 %v261
    %954 = vmatpush.msra.mxu0 %v257
    %955 = vmatpush.msra.mxu0 %v253
    %956 = vmatpush.msra.mxu0 %v249
    %957 = vmatpush.msra.mxu0 %v245
    %958 = vmatpush.msra.mxu0 %v241
    %959 = vmatpush.msra.mxu0 %v237
    %960 = vmatpush.msra.mxu0 %v233
    %961 = vmatpush.msra.mxu0 %v229
    %962 = vmatpush.msra.mxu0 %v225
    %963 = vmatpush.msra.mxu0 %v221
    %964 = vmatpush.msra.mxu0 %v217
    %965 = vmatpush.msra.mxu0 %v213
    %966 = vmatpush.msra.mxu0 %v209
    %967 = vmatpush.msra.mxu0 %v205
    %968 = vmatpush.msra.mxu0 %v201
    %969 = vmatmul.f32.gmra.mxu0 %v64
    %v970 = vpop.f32.mrf.mxu0
    %v971 = vadd.f32 %v951, %v970
    %972 = vdwg.mxu0
    %973 = vmatpush.msra.mxu0 %v325
    %974 = vmatpush.msra.mxu0 %v321
    %975 = vmatpush.msra.mxu0 %v317
    %976 = vmatpush.msra.mxu0 %v313
    %977 = vmatpush.msra.mxu0 %v309
    %978 = vmatpush.msra.mxu0 %v305
    %979 = vmatpush.msra.mxu0 %v301
    %980 = vmatpush.msra.mxu0 %v297
    %981 = vmatpush.msra.mxu0 %v293
    %982 = vmatpush.msra.mxu0 %v289
    %983 = vmatpush.msra.mxu0 %v285
    %984 = vmatpush.msra.mxu0 %v281
    %985 = vmatpush.msra.mxu0 %v277
    %986 = vmatpush.msra.mxu0 %v273
    %987 = vmatpush.msra.mxu0 %v269
    %988 = vmatpush.msra.mxu0 %v265
    %989 = vmatmul.f32.gmra.mxu0 %v65
    %v990 = vpop.f32.mrf.mxu0
    %v991 = vadd.f32 %v971, %v990
    %992 = vdwg.mxu0
    %993 = vmatpush.msra.mxu0 %v389
    %994 = vmatpush.msra.mxu0 %v385
    %995 = vmatpush.msra.mxu0 %v381
    %996 = vmatpush.msra.mxu0 %v377
    %997 = vmatpush.msra.mxu0 %v373
    %998 = vmatpush.msra.mxu0 %v369
    %999 = vmatpush.msra.mxu0 %v365
    %1000 = vmatpush.msra.mxu0 %v361
    %1001 = vmatpush.msra.mxu0 %v357
    %1002 = vmatpush.msra.mxu0 %v353
    %1003 = vmatpush.msra.mxu0 %v349
    %1004 = vmatpush.msra.mxu0 %v345
    %1005 = vmatpush.msra.mxu0 %v341
    %1006 = vmatpush.msra.mxu0 %v337
    %1007 = vmatpush.msra.mxu0 %v333
    %1008 = vmatpush.msra.mxu0 %v329
    %1009 = vmatmul.f32.gmra.mxu0 %v66
    %v1010 = vpop.f32.mrf.mxu0
    %v1011 = vadd.f32 %v991, %v1010
    %1012 = vdwg.mxu0
    %1013 = vmatpush.msra.mxu0 %v453
    %1014 = vmatpush.msra.mxu0 %v449
    %1015 = vmatpush.msra.mxu0 %v445
    %1016 = vmatpush.msra.mxu0 %v441
    %1017 = vmatpush.msra.mxu0 %v437
    %1018 = vmatpush.msra.mxu0 %v433
    %1019 = vmatpush.msra.mxu0 %v429
    %1020 = vmatpush.msra.mxu0 %v425
    %1021 = vmatpush.msra.mxu0 %v421
    %1022 = vmatpush.msra.mxu0 %v417
    %1023 = vmatpush.msra.mxu0 %v413
    %1024 = vmatpush.msra.mxu0 %v409
    %1025 = vmatpush.msra.mxu0 %v405
    %1026 = vmatpush.msra.mxu0 %v401
    %1027 = vmatpush.msra.mxu0 %v397
    %1028 = vmatpush.msra.mxu0 %v393
    %1029 = vmatmul.f32.gmra.mxu0 %v67
    %v1030 = vpop.f32.mrf.mxu0
    %v1031 = vadd.f32 %v1011, %v1030
    %1032 = vdwg.mxu0
    %1033 = vmatpush.msra.mxu0 %v517
    %1034 = vmatpush.msra.mxu0 %v513
    %1035 = vmatpush.msra.mxu0 %v509
    %1036 = vmatpush.msra.mxu0 %v505
    %1037 = vmatpush.msra.mxu0 %v501
    %1038 = vmatpush.msra.mxu0 %v497
    %1039 = vmatpush.msra.mxu0 %v493
    %1040 = vmatpush.msra.mxu0 %v489
    %1041 = vmatpush.msra.mxu0 %v485
    %1042 = vmatpush.msra.mxu0 %v481
    %1043 = vmatpush.msra.mxu0 %v477
    %1044 = vmatpush.msra.mxu0 %v473
    %1045 = vmatpush.msra.mxu0 %v469
    %1046 = vmatpush.msra.mxu0 %v465
    %1047 = vmatpush.msra.mxu0 %v461
    %1048 = vmatpush.msra.mxu0 %v457
    %1049 = vmatmul.f32.gmra.mxu0 %v68
    %v1050 = vpop.f32.mrf.mxu0
    %v1051 = vadd.f32 %v1031, %v1050
    %1052 = vdwg.mxu0
    %1053 = vmatpush.msra.mxu0 %v581
    %1054 = vmatpush.msra.mxu0 %v577
    %1055 = vmatpush.msra.mxu0 %v573
    %1056 = vmatpush.msra.mxu0 %v569
    %1057 = vmatpush.msra.mxu0 %v565
    %1058 = vmatpush.msra.mxu0 %v561
    %1059 = vmatpush.msra.mxu0 %v557
    %1060 = vmatpush.msra.mxu0 %v553
    %1061 = vmatpush.msra.mxu0 %v549
    %1062 = vmatpush.msra.mxu0 %v545
    %1063 = vmatpush.msra.mxu0 %v541
    %1064 = vmatpush.msra.mxu0 %v537
    %1065 = vmatpush.msra.mxu0 %v533
    %1066 = vmatpush.msra.mxu0 %v529
    %1067 = vmatpush.msra.mxu0 %v525
    %1068 = vmatpush.msra.mxu0 %v521
    %1069 = vmatmul.f32.gmra.mxu0 %v69
    %v1070 = vpop.f32.mrf.mxu0
    %v1071 = vadd.f32 %v1051, %v1070
    %1072 = vdwg.mxu0
    %1073 = vmatpush.msra.mxu0 %v134
    %1074 = vmatpush.msra.mxu0 %v130
    %1075 = vmatpush.msra.mxu0 %v126
    %1076 = vmatpush.msra.mxu0 %v122
    %1077 = vmatpush.msra.mxu0 %v118
    %1078 = vmatpush.msra.mxu0 %v114
    %1079 = vmatpush.msra.mxu0 %v110
    %1080 = vmatpush.msra.mxu0 %v106
    %1081 = vmatpush.msra.mxu0 %v102
    %1082 = vmatpush.msra.mxu0 %v98
    %1083 = vmatpush.msra.mxu0 %v94
    %1084 = vmatpush.msra.mxu0 %v90
    %1085 = vmatpush.msra.mxu0 %v86
    %1086 = vmatpush.msra.mxu0 %v82
    %1087 = vmatpush.msra.mxu0 %v78
    %1088 = vmatpush.msra.mxu0 %v74
    %1089 = vmatmul.f32.gmra.mxu0 %v62
    %v1090 = vpop.f32.mrf.mxu0
    %v1091 = vadd.f32 %v588, %v1090
    %1092 = vdwg.mxu0
    %1093 = vmatpush.msra.mxu0 %v198
    %1094 = vmatpush.msra.mxu0 %v194
    %1095 = vmatpush.msra.mxu0 %v190
    %1096 = vmatpush.msra.mxu0 %v186
    %1097 = vmatpush.msra.mxu0 %v182
    %1098 = vmatpush.msra.mxu0 %v178
    %1099 = vmatpush.msra.mxu0 %v174
    %1100 = vmatpush.msra.mxu0 %v170
    %1101 = vmatpush.msra.mxu0 %v166
    %1102 = vmatpush.msra.mxu0 %v162
    %1103 = vmatpush.msra.mxu0 %v158
    %1104 = vmatpush.msra.mxu0 %v154
    %1105 = vmatpush.msra.mxu0 %v150
    %1106 = vmatpush.msra.mxu0 %v146
    %1107 = vmatpush.msra.mxu0 %v142
    %1108 = vmatpush.msra.mxu0 %v138
    %1109 = vmatmul.f32.gmra.mxu0 %v63
    %v1110 = vpop.f32.mrf.mxu0
    %v1111 = vadd.f32 %v1091, %v1110
    %1112 = vdwg.mxu0
    %1113 = vmatpush.msra.mxu0 %v262
    %1114 = vmatpush.msra.mxu0 %v258
    %1115 = vmatpush.msra.mxu0 %v254
    %1116 = vmatpush.msra.mxu0 %v250
    %1117 = vmatpush.msra.mxu0 %v246
    %1118 = vmatpush.msra.mxu0 %v242
    %1119 = vmatpush.msra.mxu0 %v238
    %1120 = vmatpush.msra.mxu0 %v234
    %1121 = vmatpush.msra.mxu0 %v230
    %1122 = vmatpush.msra.mxu0 %v226
    %1123 = vmatpush.msra.mxu0 %v222
    %1124 = vmatpush.msra.mxu0 %v218
    %1125 = vmatpush.msra.mxu0 %v214
    %1126 = vmatpush.msra.mxu0 %v210
    %1127 = vmatpush.msra.mxu0 %v206
    %1128 = vmatpush.msra.mxu0 %v202
    %1129 = vmatmul.f32.gmra.mxu0 %v64
    %v1130 = vpop.f32.mrf.mxu0
    %v1131 = vadd.f32 %v1111, %v1130
    %1132 = vdwg.mxu0
    %1133 = vmatpush.msra.mxu0 %v326
    %1134 = vmatpush.msra.mxu0 %v322
    %1135 = vmatpush.msra.mxu0 %v318
    %1136 = vmatpush.msra.mxu0 %v314
    %1137 = vmatpush.msra.mxu0 %v310
    %1138 = vmatpush.msra.mxu0 %v306
    %1139 = vmatpush.msra.mxu0 %v302
    %1140 = vmatpush.msra.mxu0 %v298
    %1141 = vmatpush.msra.mxu0 %v294
    %1142 = vmatpush.msra.mxu0 %v290
    %1143 = vmatpush.msra.mxu0 %v286
    %1144 = vmatpush.msra.mxu0 %v282
    %1145 = vmatpush.msra.mxu0 %v278
    %1146 = vmatpush.msra.mxu0 %v274
    %1147 = vmatpush.msra.mxu0 %v270
    %1148 = vmatpush.msra.mxu0 %v266
    %1149 = vmatmul.f32.gmra.mxu0 %v65
    %v1150 = vpop.f32.mrf.mxu0
    %v1151 = vadd.f32 %v1131, %v1150
    %1152 = vdwg.mxu0
    %1153 = vmatpush.msra.mxu0 %v390
    %1154 = vmatpush.msra.mxu0 %v386
    %1155 = vmatpush.msra.mxu0 %v382
    %1156 = vmatpush.msra.mxu0 %v378
    %1157 = vmatpush.msra.mxu0 %v374
    %1158 = vmatpush.msra.mxu0 %v370
    %1159 = vmatpush.msra.mxu0 %v366
    %1160 = vmatpush.msra.mxu0 %v362
    %1161 = vmatpush.msra.mxu0 %v358
    %1162 = vmatpush.msra.mxu0 %v354
    %1163 = vmatpush.msra.mxu0 %v350
    %1164 = vmatpush.msra.mxu0 %v346
    %1165 = vmatpush.msra.mxu0 %v342
    %1166 = vmatpush.msra.mxu0 %v338
    %1167 = vmatpush.msra.mxu0 %v334
    %1168 = vmatpush.msra.mxu0 %v330
    %1169 = vmatmul.f32.gmra.mxu0 %v66
    %v1170 = vpop.f32.mrf.mxu0
    %v1171 = vadd.f32 %v1151, %v1170
    %1172 = vdwg.mxu0
    %1173 = vmatpush.msra.mxu0 %v454
    %1174 = vmatpush.msra.mxu0 %v450
    %1175 = vmatpush.msra.mxu0 %v446
    %1176 = vmatpush.msra.mxu0 %v442
    %1177 = vmatpush.msra.mxu0 %v438
    %1178 = vmatpush.msra.mxu0 %v434
    %1179 = vmatpush.msra.mxu0 %v430
    %1180 = vmatpush.msra.mxu0 %v426
    %1181 = vmatpush.msra.mxu0 %v422
    %1182 = vmatpush.msra.mxu0 %v418
    %1183 = vmatpush.msra.mxu0 %v414
    %1184 = vmatpush.msra.mxu0 %v410
    %1185 = vmatpush.msra.mxu0 %v406
    %1186 = vmatpush.msra.mxu0 %v402
    %1187 = vmatpush.msra.mxu0 %v398
    %1188 = vmatpush.msra.mxu0 %v394
    %1189 = vmatmul.f32.gmra.mxu0 %v67
    %v1190 = vpop.f32.mrf.mxu0
    %v1191 = vadd.f32 %v1171, %v1190
    %1192 = vdwg.mxu0
    %1193 = vmatpush.msra.mxu0 %v518
    %1194 = vmatpush.msra.mxu0 %v514
    %1195 = vmatpush.msra.mxu0 %v510
    %1196 = vmatpush.msra.mxu0 %v506
    %1197 = vmatpush.msra.mxu0 %v502
    %1198 = vmatpush.msra.mxu0 %v498
    %1199 = vmatpush.msra.mxu0 %v494
    %1200 = vmatpush.msra.mxu0 %v490
    %1201 = vmatpush.msra.mxu0 %v486
    %1202 = vmatpush.msra.mxu0 %v482
    %1203 = vmatpush.msra.mxu0 %v478
    %1204 = vmatpush.msra.mxu0 %v474
    %1205 = vmatpush.msra.mxu0 %v470
    %1206 = vmatpush.msra.mxu0 %v466
    %1207 = vmatpush.msra.mxu0 %v462
    %1208 = vmatpush.msra.mxu0 %v458
    %1209 = vmatmul.f32.gmra.mxu0 %v68
    %v1210 = vpop.f32.mrf.mxu0
    %v1211 = vadd.f32 %v1191, %v1210
    %1212 = vdwg.mxu0
    %1213 = vmatpush.msra.mxu0 %v582
    %1214 = vmatpush.msra.mxu0 %v578
    %1215 = vmatpush.msra.mxu0 %v574
    %1216 = vmatpush.msra.mxu0 %v570
    %1217 = vmatpush.msra.mxu0 %v566
    %1218 = vmatpush.msra.mxu0 %v562
    %1219 = vmatpush.msra.mxu0 %v558
    %1220 = vmatpush.msra.mxu0 %v554
    %1221 = vmatpush.msra.mxu0 %v550
    %1222 = vmatpush.msra.mxu0 %v546
    %1223 = vmatpush.msra.mxu0 %v542
    %1224 = vmatpush.msra.mxu0 %v538
    %1225 = vmatpush.msra.mxu0 %v534
    %1226 = vmatpush.msra.mxu0 %v530
    %1227 = vmatpush.msra.mxu0 %v526
    %1228 = vmatpush.msra.mxu0 %v522
    %1229 = vmatmul.f32.gmra.mxu0 %v69
    %v1230 = vpop.f32.mrf.mxu0
    %v1231 = vadd.f32 %v1211, %v1230
    %1232 = vdwg.mxu0
    %v1233 = vmax.f32 %v751, 0.0
    %v1234 = vmax.f32 %v911, 0.0
    %v1235 = vmax.f32 %v1071, 0.0
    %v1236 = vmax.f32 %v1231, 0.0
    %v1237 = vld [vmem:[%s5] sm:$0xff]
    %v1238 = vld [vmem:[%s5 + $0x8] sm:$0xff]
    %v1239 = vld [vmem:[%s5 + $0x10] sm:$0xff]
    %v1240 = vld [vmem:[%s5 + $0x18] sm:$0xff]
    %v1241 = vld [vmem:[%s5 + $0x20] sm:$0xff]
    %v1242 = vld [vmem:[%s5 + $0x28] sm:$0xff]
    %v1243 = vld [vmem:[%s5 + $0x30] sm:$0xff]
    %v1244 = vld [vmem:[%s5 + $0x38] sm:$0xff]
    %v1245 = vld [vmem:[%s5 + $0x40] sm:$0xff]
    %v1246 = vld [vmem:[%s5 + $0x48] sm:$0xff]
    %v1247 = vld [vmem:[%s5 + $0x50] sm:$0xff]
    %v1248 = vld [vmem:[%s5 + $0x58] sm:$0xff]
    %v1249 = vld [vmem:[%s5 + $0x60] sm:$0xff]
    %v1250 = vld [vmem:[%s5 + $0x68] sm:$0xff]
    %v1251 = vld [vmem:[%s5 + $0x70] sm:$0xff]
    %v1252 = vld [vmem:[%s5 + $0x78] sm:$0xff]
    %v1253 = vld [vmem:[%s5 + $0x80] sm:$0xff]
    %v1254 = vld [vmem:[%s5 + $0x88] sm:$0xff]
    %v1255 = vld [vmem:[%s5 + $0x90] sm:$0xff]
    %v1256 = vld [vmem:[%s5 + $0x98] sm:$0xff]
    %v1257 = vld [vmem:[%s5 + $0xa0] sm:$0xff]
    %v1258 = vld [vmem:[%s5 + $0xa8] sm:$0xff]
    %v1259 = vld [vmem:[%s5 + $0xb0] sm:$0xff]
    %v1260 = vld [vmem:[%s5 + $0xb8] sm:$0xff]
    %v1261 = vld [vmem:[%s5 + $0xc0] sm:$0xff]
    %v1262 = vld [vmem:[%s5 + $0xc8] sm:$0xff]
    %v1263 = vld [vmem:[%s5 + $0xd0] sm:$0xff]
    %v1264 = vld [vmem:[%s5 + $0xd8] sm:$0xff]
    %v1265 = vld [vmem:[%s5 + $0xe0] sm:$0xff]
    %v1266 = vld [vmem:[%s5 + $0xe8] sm:$0xff]
    %v1267 = vld [vmem:[%s5 + $0xf0] sm:$0xff]
    %v1268 = vld [vmem:[%s5 + $0xf8] sm:$0xff]
    %v1269 = vld [vmem:[%s5 + $0x100] sm:$0xff]
    %v1270 = vld [vmem:[%s5 + $0x108] sm:$0xff]
    %v1271 = vld [vmem:[%s5 + $0x110] sm:$0xff]
    %v1272 = vld [vmem:[%s5 + $0x118] sm:$0xff]
    %v1273 = vld [vmem:[%s5 + $0x120] sm:$0xff]
    %v1274 = vld [vmem:[%s5 + $0x128] sm:$0xff]
    %v1275 = vld [vmem:[%s5 + $0x130] sm:$0xff]
    %v1276 = vld [vmem:[%s5 + $0x138] sm:$0xff]
    %v1277 = vld [vmem:[%s5 + $0x140] sm:$0xff]
    %v1278 = vld [vmem:[%s5 + $0x148] sm:$0xff]
    %v1279 = vld [vmem:[%s5 + $0x150] sm:$0xff]
    %v1280 = vld [vmem:[%s5 + $0x158] sm:$0xff]
    %v1281 = vld [vmem:[%s5 + $0x160] sm:$0xff]
    %v1282 = vld [vmem:[%s5 + $0x168] sm:$0xff]
    %v1283 = vld [vmem:[%s5 + $0x170] sm:$0xff]
    %v1284 = vld [vmem:[%s5 + $0x178] sm:$0xff]
    %v1285 = vld [vmem:[%s5 + $0x180] sm:$0xff]
    %v1286 = vld [vmem:[%s1] sm:$0xff]
    %v1287 = vld [vmem:[%s5 + $0x188] sm:$0xff]
    %v1288 = vld [vmem:[%s5 + $0x190] sm:$0xff]
    %vm1289 = vcmask 130048
    %v1291 = vsel %vm1289, %v1286, 0
    %1293 = vmatpush.msra.mxu0 0.0
    %1294 = vmatpush.msra.mxu0 0.0
    %1295 = vmatpush.msra.mxu0 0.0
    %1296 = vmatpush.msra.mxu0 0.0
    %1297 = vmatpush.msra.mxu0 0.0
    %1298 = vmatpush.msra.mxu0 0.0
    %1299 = vmatpush.msra.mxu0 0.0
    %1300 = vmatpush.msra.mxu0 0.0
    %1301 = vmatpush.msra.mxu0 0.0
    %1302 = vmatpush.msra.mxu0 0.0
    %1303 = vmatpush.msra.mxu0 0.0
    %1304 = vmatpush.msra.mxu0 0.0
    %1305 = vmatpush.msra.mxu0 0.0
    %1306 = vmatpush.msra.mxu0 0.0
    %1307 = vmatpush.msra.mxu0 %v1288
    %1308 = vmatpush.msra.mxu0 %v1287
    %1309 = vmatmul.f32.gmra.mxu0 %v1291
    %v1310 = vpop.f32.mrf.mxu0
    %v1311 = vadd.f32 0.0, %v1310
    %1312 = vdwg.mxu0
    %vm1313 = vcmask 64512
    %v1315 = vsel %vm1313, %v1236, 0
    %1317 = vmatpush.msra.mxu0 %v1252
    %1318 = vmatpush.msra.mxu0 %v1251
    %1319 = vmatpush.msra.mxu0 %v1250
    %1320 = vmatpush.msra.mxu0 %v1249
    %1321 = vmatpush.msra.mxu0 %v1248
    %1322 = vmatpush.msra.mxu0 %v1247
    %1323 = vmatpush.msra.mxu0 %v1246
    %1324 = vmatpush.msra.mxu0 %v1245
    %1325 = vmatpush.msra.mxu0 %v1244
    %1326 = vmatpush.msra.mxu0 %v1243
    %1327 = vmatpush.msra.mxu0 %v1242
    %1328 = vmatpush.msra.mxu0 %v1241
    %1329 = vmatpush.msra.mxu0 %v1240
    %1330 = vmatpush.msra.mxu0 %v1239
    %1331 = vmatpush.msra.mxu0 %v1238
    %1332 = vmatpush.msra.mxu0 %v1237
    %1333 = vmatmul.f32.gmra.mxu0 %v1233
    %v1334 = vpop.f32.mrf.mxu0
    %v1335 = vadd.f32 %v1311, %v1334
    %1336 = vdwg.mxu0
    %1337 = vmatpush.msra.mxu0 %v1268
    %1338 = vmatpush.msra.mxu0 %v1267
    %1339 = vmatpush.msra.mxu0 %v1266
    %1340 = vmatpush.msra.mxu0 %v1265
    %1341 = vmatpush.msra.mxu0 %v1264
    %1342 = vmatpush.msra.mxu0 %v1263
    %1343 = vmatpush.msra.mxu0 %v1262
    %1344 = vmatpush.msra.mxu0 %v1261
    %1345 = vmatpush.msra.mxu0 %v1260
    %1346 = vmatpush.msra.mxu0 %v1259
    %1347 = vmatpush.msra.mxu0 %v1258
    %1348 = vmatpush.msra.mxu0 %v1257
    %1349 = vmatpush.msra.mxu0 %v1256
    %1350 = vmatpush.msra.mxu0 %v1255
    %1351 = vmatpush.msra.mxu0 %v1254
    %1352 = vmatpush.msra.mxu0 %v1253
    %1353 = vmatmul.f32.gmra.mxu0 %v1234
    %v1354 = vpop.f32.mrf.mxu0
    %v1355 = vadd.f32 %v1335, %v1354
    %1356 = vdwg.mxu0
    %1357 = vmatpush.msra.mxu0 %v1284
    %1358 = vmatpush.msra.mxu0 %v1283
    %1359 = vmatpush.msra.mxu0 %v1282
    %1360 = vmatpush.msra.mxu0 %v1281
    %1361 = vmatpush.msra.mxu0 %v1280
    %1362 = vmatpush.msra.mxu0 %v1279
    %1363 = vmatpush.msra.mxu0 %v1278
    %1364 = vmatpush.msra.mxu0 %v1277
    %1365 = vmatpush.msra.mxu0 %v1276
    %1366 = vmatpush.msra.mxu0 %v1275
    %1367 = vmatpush.msra.mxu0 %v1274
    %1368 = vmatpush.msra.mxu0 %v1273
    %1369 = vmatpush.msra.mxu0 %v1272
    %1370 = vmatpush.msra.mxu0 %v1271
    %1371 = vmatpush.msra.mxu0 %v1270
    %1372 = vmatpush.msra.mxu0 %v1269
    %1373 = vmatmul.f32.gmra.mxu0 %v1235
    %v1374 = vpop.f32.mrf.mxu0
    %v1375 = vadd.f32 %v1355, %v1374
    %1376 = vdwg.mxu0
    %1377 = vmatpush.msra.mxu0 0.0
    %1378 = vmatpush.msra.mxu0 0.0
    %1379 = vmatpush.msra.mxu0 0.0
    %1380 = vmatpush.msra.mxu0 0.0
    %1381 = vmatpush.msra.mxu0 0.0
    %1382 = vmatpush.msra.mxu0 0.0
    %1383 = vmatpush.msra.mxu0 0.0
    %1384 = vmatpush.msra.mxu0 0.0
    %1385 = vmatpush.msra.mxu0 0.0
    %1386 = vmatpush.msra.mxu0 0.0
    %1387 = vmatpush.msra.mxu0 0.0
    %1388 = vmatpush.msra.mxu0 0.0
    %1389 = vmatpush.msra.mxu0 0.0
    %1390 = vmatpush.msra.mxu0 0.0
    %1391 = vmatpush.msra.mxu0 0.0
    %1392 = vmatpush.msra.mxu0 %v1285
    %1393 = vmatmul.f32.gmra.mxu0 %v1315
    %v1394 = vpop.f32.mrf.mxu0
    %v1395 = vadd.f32 %v1375, %v1394
    %1396 = vdwg.mxu0
    %v1397 = vld [vmem:[%s6] sm:$0x1]
    %v1399 = vperm.slane %v1397, 0
    %v1401 = vadd.f32 %v1395, %v1399
    %v1402 = vmax.f32 %v1401, 0.0
    %v1403 = vld [vmem:[%s7] sm:$0xff]
    %v1404 = vld [vmem:[%s7 + $0x8] sm:$0xff]
    %v1405 = vld [vmem:[%s7 + $0x10] sm:$0xff]
    %v1406 = vld [vmem:[%s7 + $0x18] sm:$0xff]
    %v1407 = vld [vmem:[%s7 + $0x20] sm:$0xff]
    %v1408 = vld [vmem:[%s7 + $0x28] sm:$0xff]
    %v1409 = vld [vmem:[%s7 + $0x30] sm:$0xff]
    %v1410 = vld [vmem:[%s7 + $0x38] sm:$0xff]
    %v1411 = vld [vmem:[%s7 + $0x40] sm:$0xff]
    %v1412 = vld [vmem:[%s7 + $0x48] sm:$0xff]
    %v1413 = vld [vmem:[%s7 + $0x50] sm:$0xff]
    %v1414 = vld [vmem:[%s7 + $0x58] sm:$0xff]
    %v1415 = vld [vmem:[%s7 + $0x60] sm:$0xff]
    %v1416 = vld [vmem:[%s7 + $0x68] sm:$0xff]
    %v1417 = vld [vmem:[%s7 + $0x70] sm:$0xff]
    %v1418 = vld [vmem:[%s7 + $0x78] sm:$0xff]
    %v1419 = vld [vmem:[%s7 + $0x80] sm:$0xff]
    %v1420 = vld [vmem:[%s7 + $0x88] sm:$0xff]
    %v1421 = vld [vmem:[%s7 + $0x90] sm:$0xff]
    %v1422 = vld [vmem:[%s7 + $0x98] sm:$0xff]
    %v1423 = vld [vmem:[%s7 + $0xa0] sm:$0xff]
    %v1424 = vld [vmem:[%s7 + $0xa8] sm:$0xff]
    %v1425 = vld [vmem:[%s7 + $0xb0] sm:$0xff]
    %v1426 = vld [vmem:[%s7 + $0xb8] sm:$0xff]
    %v1427 = vld [vmem:[%s7 + $0xc0] sm:$0xff]
    %v1428 = vld [vmem:[%s7 + $0xc8] sm:$0xff]
    %v1429 = vld [vmem:[%s7 + $0xd0] sm:$0xff]
    %v1430 = vld [vmem:[%s7 + $0xd8] sm:$0xff]
    %v1431 = vld [vmem:[%s7 + $0xe0] sm:$0xff]
    %v1432 = vld [vmem:[%s7 + $0xe8] sm:$0xff]
    %v1433 = vld [vmem:[%s7 + $0xf0] sm:$0xff]
    %v1434 = vld [vmem:[%s7 + $0xf8] sm:$0xff]
    %v1435 = vld [vmem:[%s7 + $0x100] sm:$0xff]
    %v1436 = vld [vmem:[%s7 + $0x108] sm:$0xff]
    %v1437 = vld [vmem:[%s7 + $0x110] sm:$0xff]
    %v1438 = vld [vmem:[%s7 + $0x118] sm:$0xff]
    %v1439 = vld [vmem:[%s7 + $0x120] sm:$0xff]
    %v1440 = vld [vmem:[%s7 + $0x128] sm:$0xff]
    %v1441 = vld [vmem:[%s7 + $0x130] sm:$0xff]
    %v1442 = vld [vmem:[%s7 + $0x138] sm:$0xff]
    %v1443 = vld [vmem:[%s7 + $0x140] sm:$0xff]
    %v1444 = vld [vmem:[%s7 + $0x148] sm:$0xff]
    %v1445 = vld [vmem:[%s7 + $0x150] sm:$0xff]
    %v1446 = vld [vmem:[%s7 + $0x158] sm:$0xff]
    %v1447 = vld [vmem:[%s7 + $0x160] sm:$0xff]
    %v1448 = vld [vmem:[%s7 + $0x168] sm:$0xff]
    %v1449 = vld [vmem:[%s7 + $0x170] sm:$0xff]
    %v1450 = vld [vmem:[%s7 + $0x178] sm:$0xff]
    %v1451 = vld [vmem:[%s9] sm:$0x7]
    %v1453 = vperm.slane %v1451, 0
    %v1454 = vperm.slane %v1451, 1
    %v1455 = vperm.slane %v1451, 2
    %1459 = vmatpush.msra.mxu0 %v1448
    %1460 = vmatpush.msra.mxu0 %v1445
    %1461 = vmatpush.msra.mxu0 %v1442
    %1462 = vmatpush.msra.mxu0 %v1439
    %1463 = vmatpush.msra.mxu0 %v1436
    %1464 = vmatpush.msra.mxu0 %v1433
    %1465 = vmatpush.msra.mxu0 %v1430
    %1466 = vmatpush.msra.mxu0 %v1427
    %1467 = vmatpush.msra.mxu0 %v1424
    %1468 = vmatpush.msra.mxu0 %v1421
    %1469 = vmatpush.msra.mxu0 %v1418
    %1470 = vmatpush.msra.mxu0 %v1415
    %1471 = vmatpush.msra.mxu0 %v1412
    %1472 = vmatpush.msra.mxu0 %v1409
    %1473 = vmatpush.msra.mxu0 %v1406
    %1474 = vmatpush.msra.mxu0 %v1403
    %1475 = vmatmul.f32.gmra.mxu0 %v1402
    %v1476 = vpop.f32.mrf.mxu0
    %v1477 = vadd.f32 %v1453, %v1476
    %1478 = vdwg.mxu0
    %1479 = vmatpush.msra.mxu0 %v1449
    %1480 = vmatpush.msra.mxu0 %v1446
    %1481 = vmatpush.msra.mxu0 %v1443
    %1482 = vmatpush.msra.mxu0 %v1440
    %1483 = vmatpush.msra.mxu0 %v1437
    %1484 = vmatpush.msra.mxu0 %v1434
    %1485 = vmatpush.msra.mxu0 %v1431
    %1486 = vmatpush.msra.mxu0 %v1428
    %1487 = vmatpush.msra.mxu0 %v1425
    %1488 = vmatpush.msra.mxu0 %v1422
    %1489 = vmatpush.msra.mxu0 %v1419
    %1490 = vmatpush.msra.mxu0 %v1416
    %1491 = vmatpush.msra.mxu0 %v1413
    %1492 = vmatpush.msra.mxu0 %v1410
    %1493 = vmatpush.msra.mxu0 %v1407
    %1494 = vmatpush.msra.mxu0 %v1404
    %1495 = vmatmul.f32.gmra.mxu0 %v1402
    %v1496 = vpop.f32.mrf.mxu0
    %v1497 = vadd.f32 %v1454, %v1496
    %1498 = vdwg.mxu0
    %1499 = vmatpush.msra.mxu0 %v1450
    %1500 = vmatpush.msra.mxu0 %v1447
    %1501 = vmatpush.msra.mxu0 %v1444
    %1502 = vmatpush.msra.mxu0 %v1441
    %1503 = vmatpush.msra.mxu0 %v1438
    %1504 = vmatpush.msra.mxu0 %v1435
    %1505 = vmatpush.msra.mxu0 %v1432
    %1506 = vmatpush.msra.mxu0 %v1429
    %1507 = vmatpush.msra.mxu0 %v1426
    %1508 = vmatpush.msra.mxu0 %v1423
    %1509 = vmatpush.msra.mxu0 %v1420
    %1510 = vmatpush.msra.mxu0 %v1417
    %1511 = vmatpush.msra.mxu0 %v1414
    %1512 = vmatpush.msra.mxu0 %v1411
    %1513 = vmatpush.msra.mxu0 %v1408
    %1514 = vmatpush.msra.mxu0 %v1405
    %1515 = vmatmul.f32.gmra.mxu0 %v1402
    %v1516 = vpop.f32.mrf.mxu0
    %v1517 = vadd.f32 %v1455, %v1516
    %1518 = vdwg.mxu0
    %v1519 = vld [vmem:[%s8] sm:$0xff]
    %v1520 = vld [vmem:[%s8 + $0x8] sm:$0xff]
    %v1521 = vld [vmem:[%s8 + $0x10] sm:$0xff]
    %v1522 = vld [vmem:[%s8 + $0x18] sm:$0xff]
    %v1523 = vld [vmem:[%s8 + $0x20] sm:$0xff]
    %v1524 = vld [vmem:[%s8 + $0x28] sm:$0xff]
    %v1525 = vld [vmem:[%s8 + $0x30] sm:$0xff]
    %v1526 = vld [vmem:[%s8 + $0x38] sm:$0xff]
    %v1527 = vld [vmem:[%s8 + $0x40] sm:$0xff]
    %v1528 = vld [vmem:[%s8 + $0x48] sm:$0xff]
    %v1529 = vld [vmem:[%s8 + $0x50] sm:$0xff]
    %v1530 = vld [vmem:[%s8 + $0x58] sm:$0xff]
    %v1531 = vld [vmem:[%s8 + $0x60] sm:$0xff]
    %v1532 = vld [vmem:[%s8 + $0x68] sm:$0xff]
    %v1533 = vld [vmem:[%s8 + $0x70] sm:$0xff]
    %v1534 = vld [vmem:[%s8 + $0x78] sm:$0xff]
    %v1535 = vld [vmem:[%s8 + $0x80] sm:$0xff]
    %v1536 = vld [vmem:[%s8 + $0x88] sm:$0xff]
    %v1537 = vld [vmem:[%s8 + $0x90] sm:$0xff]
    %v1538 = vld [vmem:[%s8 + $0x98] sm:$0xff]
    %v1539 = vld [vmem:[%s8 + $0xa0] sm:$0xff]
    %v1540 = vld [vmem:[%s8 + $0xa8] sm:$0xff]
    %v1541 = vld [vmem:[%s8 + $0xb0] sm:$0xff]
    %v1542 = vld [vmem:[%s8 + $0xb8] sm:$0xff]
    %v1543 = vld [vmem:[%s8 + $0xc0] sm:$0xff]
    %v1544 = vld [vmem:[%s8 + $0xc8] sm:$0xff]
    %v1545 = vld [vmem:[%s8 + $0xd0] sm:$0xff]
    %v1546 = vld [vmem:[%s8 + $0xd8] sm:$0xff]
    %v1547 = vld [vmem:[%s8 + $0xe0] sm:$0xff]
    %v1548 = vld [vmem:[%s8 + $0xe8] sm:$0xff]
    %v1549 = vld [vmem:[%s8 + $0xf0] sm:$0xff]
    %v1550 = vld [vmem:[%s8 + $0xf8] sm:$0xff]
    %v1551 = vld [vmem:[%s8 + $0x100] sm:$0xff]
    %v1552 = vld [vmem:[%s8 + $0x108] sm:$0xff]
    %v1553 = vld [vmem:[%s8 + $0x110] sm:$0xff]
    %v1554 = vld [vmem:[%s8 + $0x118] sm:$0xff]
    %v1555 = vld [vmem:[%s8 + $0x120] sm:$0xff]
    %v1556 = vld [vmem:[%s8 + $0x128] sm:$0xff]
    %v1557 = vld [vmem:[%s8 + $0x130] sm:$0xff]
    %v1558 = vld [vmem:[%s8 + $0x138] sm:$0xff]
    %v1559 = vld [vmem:[%s8 + $0x140] sm:$0xff]
    %v1560 = vld [vmem:[%s8 + $0x148] sm:$0xff]
    %v1561 = vld [vmem:[%s8 + $0x150] sm:$0xff]
    %v1562 = vld [vmem:[%s8 + $0x158] sm:$0xff]
    %v1563 = vld [vmem:[%s8 + $0x160] sm:$0xff]
    %v1564 = vld [vmem:[%s8 + $0x168] sm:$0xff]
    %v1565 = vld [vmem:[%s8 + $0x170] sm:$0xff]
    %v1566 = vld [vmem:[%s8 + $0x178] sm:$0xff]
    %1567 = vmatpush.msra.mxu0 %v1564
    %1568 = vmatpush.msra.mxu0 %v1561
    %1569 = vmatpush.msra.mxu0 %v1558
    %1570 = vmatpush.msra.mxu0 %v1555
    %1571 = vmatpush.msra.mxu0 %v1552
    %1572 = vmatpush.msra.mxu0 %v1549
    %1573 = vmatpush.msra.mxu0 %v1546
    %1574 = vmatpush.msra.mxu0 %v1543
    %1575 = vmatpush.msra.mxu0 %v1540
    %1576 = vmatpush.msra.mxu0 %v1537
    %1577 = vmatpush.msra.mxu0 %v1534
    %1578 = vmatpush.msra.mxu0 %v1531
    %1579 = vmatpush.msra.mxu0 %v1528
    %1580 = vmatpush.msra.mxu0 %v1525
    %1581 = vmatpush.msra.mxu0 %v1522
    %1582 = vmatpush.msra.mxu0 %v1519
    %1583 = vmatmul.f32.gmra.mxu0 %v70
    %v1584 = vpop.f32.mrf.mxu0
    %v1585 = vadd.f32 0.0, %v1584
    %1586 = vdwg.mxu0
    %1587 = vmatpush.msra.mxu0 %v1565
    %1588 = vmatpush.msra.mxu0 %v1562
    %1589 = vmatpush.msra.mxu0 %v1559
    %1590 = vmatpush.msra.mxu0 %v1556
    %1591 = vmatpush.msra.mxu0 %v1553
    %1592 = vmatpush.msra.mxu0 %v1550
    %1593 = vmatpush.msra.mxu0 %v1547
    %1594 = vmatpush.msra.mxu0 %v1544
    %1595 = vmatpush.msra.mxu0 %v1541
    %1596 = vmatpush.msra.mxu0 %v1538
    %1597 = vmatpush.msra.mxu0 %v1535
    %1598 = vmatpush.msra.mxu0 %v1532
    %1599 = vmatpush.msra.mxu0 %v1529
    %1600 = vmatpush.msra.mxu0 %v1526
    %1601 = vmatpush.msra.mxu0 %v1523
    %1602 = vmatpush.msra.mxu0 %v1520
    %1603 = vmatmul.f32.gmra.mxu0 %v70
    %v1604 = vpop.f32.mrf.mxu0
    %v1605 = vadd.f32 0.0, %v1604
    %1606 = vdwg.mxu0
    %1607 = vmatpush.msra.mxu0 %v1566
    %1608 = vmatpush.msra.mxu0 %v1563
    %1609 = vmatpush.msra.mxu0 %v1560
    %1610 = vmatpush.msra.mxu0 %v1557
    %1611 = vmatpush.msra.mxu0 %v1554
    %1612 = vmatpush.msra.mxu0 %v1551
    %1613 = vmatpush.msra.mxu0 %v1548
    %1614 = vmatpush.msra.mxu0 %v1545
    %1615 = vmatpush.msra.mxu0 %v1542
    %1616 = vmatpush.msra.mxu0 %v1539
    %1617 = vmatpush.msra.mxu0 %v1536
    %1618 = vmatpush.msra.mxu0 %v1533
    %1619 = vmatpush.msra.mxu0 %v1530
    %1620 = vmatpush.msra.mxu0 %v1527
    %1621 = vmatpush.msra.mxu0 %v1524
    %1622 = vmatpush.msra.mxu0 %v1521
    %1623 = vmatmul.f32.gmra.mxu0 %v70
    %v1624 = vpop.f32.mrf.mxu0
    %v1625 = vadd.f32 0.0, %v1624
    %1626 = vdwg.mxu0
    %v1627 = vadd.f32 %v1477, %v1585
    %v1628 = vxor.u32 %v1627, 2147483648
    %v1629 = vmul.f32 %v1628, 1.442695
    %v1630 = vpow.pop %v1629
    %v1631 = vadd.f32 %v1630, 1.0
    %v1632 = vrcp.pop %v1631
    %v1633 = vmul.f32 %v1631, %v1632
    %v1634 = vsub.f32 1.0, %v1633
    %v1635 = vmul.f32 %v1632, %v1634
    %v1636 = vadd.f32 %v1632, %v1635
    %vm1637 = vweird.f32 %v1631
    %vm1638 = vweird.f32 %v1632
    %vm1639 = vmor %vm1637, %vm1638
    %v1640 = vsel %vm1639, %v1632, %v1636
    %v1641 = vand.u32 2147483647, %v1631
    %vm1642 = vcmp.eq.f32.partialorder %v1641, 8.507059e+37
    %v1643 = vand.u32 %v1631, 2147483648
    %v1644 = vor.u32 1.1754944e-38, %v1643
    %v1645 = vsel %vm1642, %v1644, %v1640
    %v1646 = vmul.f32 1.0, %v1645
    %v1647 = vadd.f32 %v1497, %v1605
    %v1648 = vxor.u32 %v1647, 2147483648
    %v1649 = vmul.f32 %v1648, 1.442695
    %v1650 = vpow.pop %v1649
    %v1651 = vadd.f32 %v1650, 1.0
    %v1652 = vrcp.pop %v1651
    %v1653 = vmul.f32 %v1651, %v1652
    %v1654 = vsub.f32 1.0, %v1653
    %v1655 = vmul.f32 %v1652, %v1654
    %v1656 = vadd.f32 %v1652, %v1655
    %vm1657 = vweird.f32 %v1651
    %vm1658 = vweird.f32 %v1652
    %vm1659 = vmor %vm1657, %vm1658
    %v1660 = vsel %vm1659, %v1652, %v1656
    %v1661 = vand.u32 2147483647, %v1651
    %vm1662 = vcmp.eq.f32.partialorder %v1661, 8.507059e+37
    %v1663 = vand.u32 %v1651, 2147483648
    %v1664 = vor.u32 1.1754944e-38, %v1663
    %v1665 = vsel %vm1662, %v1664, %v1660
    %v1666 = vmul.f32 1.0, %v1665
    %v1667 = vld [vmem:[%s10] sm:$0x1]
    %v1669 = vperm.slane %v1667, 0
    %v1671 = vadd.f32 %v1625, %v1669
    %v1672 = vmul.f32 %v1646, %v1671
    %v1673 = vadd.f32 %v1517, %v1672
    %v1674 = vtanh.pop %v1673
    %v1675 = vsub.f32 1.0, %v1666
    %v1676 = vmul.f32 %v1675, %v1674
    %v1677 = vmul.f32 %v1666, %v70
    %v1678 = vadd.f32 %v1676, %v1677
    %v1679 = vld [vmem:[%s11] sm:$0xff]
    %v1680 = vld [vmem:[%s11 + $0x8] sm:$0xff]
    %v1681 = vld [vmem:[%s11 + $0x10] sm:$0xff]
    %v1682 = vld [vmem:[%s11 + $0x18] sm:$0xff]
    %v1683 = vld [vmem:[%s11 + $0x20] sm:$0xff]
    %v1684 = vld [vmem:[%s11 + $0x28] sm:$0xff]
    %v1685 = vld [vmem:[%s11 + $0x30] sm:$0xff]
    %v1686 = vld [vmem:[%s11 + $0x38] sm:$0xff]
    %v1687 = vld [vmem:[%s11 + $0x40] sm:$0xff]
    %v1688 = vld [vmem:[%s11 + $0x48] sm:$0xff]
    %v1689 = vld [vmem:[%s11 + $0x50] sm:$0xff]
    %v1690 = vld [vmem:[%s11 + $0x58] sm:$0xff]
    %v1691 = vld [vmem:[%s11 + $0x60] sm:$0xff]
    %v1692 = vld [vmem:[%s11 + $0x68] sm:$0xff]
    %v1693 = vld [vmem:[%s11 + $0x70] sm:$0xff]
    %v1694 = vld [vmem:[%s11 + $0x78] sm:$0xff]
    %v1695 = vld [vmem:[%s12] sm:$0x1]
    %v1697 = vperm.slane %v1695, 0
    %1699 = vmatpush.msra.mxu0 %v1694
    %1700 = vmatpush.msra.mxu0 %v1693
    %1701 = vmatpush.msra.mxu0 %v1692
    %1702 = vmatpush.msra.mxu0 %v1691
    %1703 = vmatpush.msra.mxu0 %v1690
    %1704 = vmatpush.msra.mxu0 %v1689
    %1705 = vmatpush.msra.mxu0 %v1688
    %1706 = vmatpush.msra.mxu0 %v1687
    %1707 = vmatpush.msra.mxu0 %v1686
    %1708 = vmatpush.msra.mxu0 %v1685
    %1709 = vmatpush.msra.mxu0 %v1684
    %1710 = vmatpush.msra.mxu0 %v1683
    %1711 = vmatpush.msra.mxu0 %v1682
    %1712 = vmatpush.msra.mxu0 %v1681
    %1713 = vmatpush.msra.mxu0 %v1680
    %1714 = vmatpush.msra.mxu0 %v1679
    %1715 = vmatmul.f32.gmra.mxu0 %v1678
    %v1716 = vpop.f32.mrf.mxu0
    %v1717 = vadd.f32 %v1697, %v1716
    %1718 = vdwg.mxu0
    %1719 = vst [vmem:[#allocation5] sm:$0xff] %v1717
    %1720 = vst [vmem:[#allocation6] sm:$0xff] %v1678
    // Predicated region
    $region58: #{tpu_custom_call.1} parent=1 // pred_check
      _
    $region59: #{tpu_custom_call.1} parent=1 // pred_check_branch
      %1722 = sbr.rel (0) target = $region61
    $region60: #{tpu_custom_call.1} parent=1 // pred_region
      %1724 = vsyncadd [#allocation4], 0
      %s1726 = sshll.u32 [#allocation5], 4
      %s1727 = int_to_ptr.vmem [resolvable:$true] %s1726
      %s1728 = sshll.u32 %s13, 4
      %s1729 = int_to_ptr.hbm [resolvable:$true] %s1728
      %1731 = dma.vmem_to_hbm [thread:$0]  %s1727, 128, %s1729, [#allocation4]
    $region61: #{tpu_custom_call.1} parent=1 // pred_fallthru
      _
    // Predicated region
    $region62: #{tpu_custom_call.1} parent=1 // pred_check
      _
    $region63: #{tpu_custom_call.1} parent=1 // pred_check_branch
      %1733 = sbr.rel (0) target = $region65
    $region64: #{tpu_custom_call.1} parent=1 // pred_region
      %1735 = vsyncadd [#allocation7], 0
      %s1737 = sshll.u32 [#allocation6], 4
      %s1738 = int_to_ptr.vmem [resolvable:$true] %s1737
      %s1739 = sshll.u32 %s14, 4
      %s1740 = int_to_ptr.hbm [resolvable:$true] %s1739
      %1742 = dma.vmem_to_hbm [thread:$0]  %s1738, 128, %s1740, [#allocation7]
    $region65: #{tpu_custom_call.1} parent=1 // pred_fallthru
      _
    // Predicated region
    $region66: #{tpu_custom_call.1} parent=1 // pred_check
      _
    $region67: #{tpu_custom_call.1} parent=1 // pred_check_branch
      %1744 = sbr.rel (0) target = $region69
    $region68: #{tpu_custom_call.1} parent=1 // pred_region
      %1746 = dma.done [#allocation4], 128
    $region69: #{tpu_custom_call.1} parent=1 // pred_fallthru
      _
    // Predicated region
    $region70: #{tpu_custom_call.1} parent=1 // pred_check
      _
    $region71: #{tpu_custom_call.1} parent=1 // pred_check_branch
      %1748 = sbr.rel (0) target = $region73
    $region72: #{tpu_custom_call.1} parent=1 // pred_region
      %1750 = dma.done [#allocation7], 128
    $region73: #{tpu_custom_call.1} parent=1 // pred_fallthru
      _
    %1751 = vsyncpa [#allocation3], 1
    %1752 = vsyncpa [#allocation4], 1
    %1753 = vsyncpa [#allocation7], 1

</llo_original>
